<compile_context>
chip_gen: v7x
topology: tpu7x:2x2x1
jax: 0.10.0
libtpu: 0.0.40
codegen_flags: <defaults>
</compile_context>

<pallas_src>
import functools
import math

import jax
import jax.numpy as jnp
from jax.experimental import pallas as pl
from jax.experimental.pallas import tpu as pltpu

LANE = 128          # lane width / channel padding granularity
MAX_TM = 256        # max rows tile (feeds full MXU on v6e/v7x; >=2 blocks -> 2 TCs)
MAX_TK = 512        # if padded K fits in <= MAX_TK we use the single-K kernel
VMEM_LIMIT = 32 * 1024 * 1024


def _round_up(x, m):
    return ((x + m - 1) // m) * m


# ---------------------------------------------------------------------------
# Pallas kernels
#   out = epi( pro(x) @ W )
#     pro(x) = relu?(x * s_in + b_in)   (per-K-column affine = folded BN)
#     epi(y) = relu?(y + b_out)         (BN scale already folded into W cols)
# ---------------------------------------------------------------------------
def _mm_kernel_single(has_pro, pro_relu, has_bias, epi_relu, *refs):
    """Single K block: no accumulator scratch, no reduction loop."""
    idx = 0
    x_ref = refs[idx]; idx += 1
    if has_pro:
        s_ref = refs[idx]; b_ref = refs[idx + 1]; idx += 2
    w_ref = refs[idx]; idx += 1
    if has_bias:
        bo_ref = refs[idx]; idx += 1
    o_ref = refs[idx]

    x = x_ref[...]
    if has_pro:
        xf = x.astype(jnp.float32) * s_ref[...] + b_ref[...]
        if pro_relu:
            xf = jnp.maximum(xf, 0.0)
        x = xf.astype(w_ref.dtype)
    y = jnp.dot(x, w_ref[...], preferred_element_type=jnp.float32)
    if has_bias:
        y = y + bo_ref[...]
    if epi_relu:
        y = jnp.maximum(y, 0.0)
    o_ref[...] = y.astype(o_ref.dtype)


def _mm_kernel_kloop(has_pro, pro_relu, has_bias, epi_relu, *refs):
    """General variant with a reduction grid axis (K > MAX_TK fallback)."""
    refs = list(refs)
    acc_ref = refs.pop()
    o_ref = refs.pop()
    idx = 0
    x_ref = refs[idx]; idx += 1
    if has_pro:
        s_ref = refs[idx]; b_ref = refs[idx + 1]; idx += 2
    w_ref = refs[idx]; idx += 1
    bo_ref = refs[idx] if has_bias else None

    k = pl.program_id(2)

    @pl.when(k == 0)
    def _():
        acc_ref[...] = jnp.zeros_like(acc_ref)

    x = x_ref[...]
    if has_pro:
        xf = x.astype(jnp.float32) * s_ref[...] + b_ref[...]
        if pro_relu:
            xf = jnp.maximum(xf, 0.0)
        x = xf.astype(w_ref.dtype)
    acc_ref[...] += jnp.dot(x, w_ref[...], preferred_element_type=jnp.float32)

    @pl.when(k == pl.num_programs(2) - 1)
    def _():
        y = acc_ref[...]
        if has_bias:
            y = y + bo_ref[...]
        if epi_relu:
            y = jnp.maximum(y, 0.0)
        o_ref[...] = y.astype(o_ref.dtype)


def fused_matmul(x, w_p, s_in=None, b_in=None, b_out=None,
                 pro_relu=False, epi_relu=False, n_out=None,
                 out_dtype=jnp.bfloat16):
    """x: (M, K) unpadded activations.  w_p: (Kp, Np) pre-padded bf16 weights.
    s_in/b_in: (1, Kp) f32 prologue BN.  b_out: (1, Np) f32 epilogue bias."""
    M, K = x.shape
    Kp, Np = w_p.shape
    has_pro = s_in is not None
    has_bias = b_out is not None
    if n_out is None:
        n_out = Np

    # Tile sizes: large M tiles, lane-dense N tiles, K in one block if possible.
    Mp_min = _round_up(M, 16)                       # bf16 sublane packing
    TM = MAX_TM if Mp_min >= MAX_TM else Mp_min
    Mp = _round_up(M, TM)
    TN = 256 if Np % 256 == 0 else 128
    single_k = Kp <= MAX_TK
    if single_k:
        TK = Kp
    else:
        TK = 512 if Kp % 512 == 0 else (256 if Kp % 256 == 0 else 128)

    xp = x if x.dtype == jnp.bfloat16 else x.astype(jnp.bfloat16)
    if Mp != M or Kp != K:
        xp = jnp.pad(xp, ((0, Mp - M), (0, Kp - K)))

    itemsize = 2  # bf16
    cost = pl.CostEstimate(
        flops=2 * Mp * Kp * Np,
        transcendentals=0,
        bytes_accessed=(Mp * Kp + Kp * Np + Mp * Np) * itemsize)

    if single_k:
        kernel = functools.partial(_mm_kernel_single,
                                   has_pro, pro_relu, has_bias, epi_relu)
        inputs = [xp]
        in_specs = [pl.BlockSpec((TM, Kp), lambda i, j: (i, 0))]
        if has_pro:
            inputs += [s_in, b_in]
            in_specs += [pl.BlockSpec((1, Kp), lambda i, j: (0, 0))] * 2
        inputs.append(w_p)
        in_specs.append(pl.BlockSpec((Kp, TN), lambda i, j: (0, j)))
        if has_bias:
            inputs.append(b_out)
            in_specs.append(pl.BlockSpec((1, TN), lambda i, j: (0, j)))
        out = pl.pallas_call(
            kernel,
            out_shape=jax.ShapeDtypeStruct((Mp, Np), out_dtype),
            grid_spec=pltpu.PrefetchScalarGridSpec(
                num_scalar_prefetch=0,
                grid=(Mp // TM, Np // TN),
                in_specs=in_specs,
                out_specs=pl.BlockSpec((TM, TN), lambda i, j: (i, j)),
            ),
            compiler_params=pltpu.CompilerParams(
                dimension_semantics=("parallel", "parallel"),
                vmem_limit_bytes=VMEM_LIMIT),
            cost_estimate=cost,
        )(*inputs)
    else:
        kernel = functools.partial(_mm_kernel_kloop,
                                   has_pro, pro_relu, has_bias, epi_relu)
        inputs = [xp]
        in_specs = [pl.BlockSpec((TM, TK), lambda i, j, k: (i, k))]
        if has_pro:
            inputs += [s_in, b_in]
            in_specs += [pl.BlockSpec((1, TK), lambda i, j, k: (0, k))] * 2
        inputs.append(w_p)
        in_specs.append(pl.BlockSpec((TK, TN), lambda i, j, k: (k, j)))
        if has_bias:
            inputs.append(b_out)
            in_specs.append(pl.BlockSpec((1, TN), lambda i, j, k: (0, j)))
        out = pl.pallas_call(
            kernel,
            out_shape=jax.ShapeDtypeStruct((Mp, Np), out_dtype),
            grid_spec=pltpu.PrefetchScalarGridSpec(
                num_scalar_prefetch=0,
                grid=(Mp // TM, Np // TN, Kp // TK),
                in_specs=in_specs,
                out_specs=pl.BlockSpec((TM, TN), lambda i, j, k: (i, j)),
                scratch_shapes=[pltpu.VMEM((TM, TN), jnp.float32)],
            ),
            compiler_params=pltpu.CompilerParams(
                dimension_semantics=("parallel", "parallel", "arbitrary"),
                vmem_limit_bytes=VMEM_LIMIT),
            cost_estimate=cost,
        )(*inputs)
    return out[:M, :n_out]


# ---------------------------------------------------------------------------
# Plain-JAX glue: im2col (spatial convs only), pooling
# ---------------------------------------------------------------------------
def im2col(x_nhwc, kh, kw, stride, pad):
    N, H, W, C = x_nhwc.shape
    if kh == 1 and kw == 1 and stride == 1 and pad == 0:
        return x_nhwc.reshape(N * H * W, C), (N, H, W)   # 1x1 conv: pure reshape
    xp = jnp.pad(x_nhwc, ((0, 0), (pad, pad), (pad, pad), (0, 0)))
    Ho = (H + 2 * pad - kh) // stride + 1
    Wo = (W + 2 * pad - kw) // stride + 1
    cols = []
    for i in range(kh):
        for j in range(kw):
            cols.append(xp[:, i:i + stride * Ho:stride, j:j + stride * Wo:stride, :])
    cols = jnp.concatenate(cols, axis=-1)  # (N, Ho, Wo, kh*kw*C)
    return cols.reshape(N * Ho * Wo, kh * kw * C), (N, Ho, Wo)


def max_pool_3x3_s2_p1(x_nhwc):
    return jax.lax.reduce_window(
        x_nhwc, jnp.array(-jnp.inf, x_nhwc.dtype), jax.lax.max,
        window_dimensions=(1, 3, 3, 1), window_strides=(1, 2, 2, 1),
        padding=((0, 0), (1, 1), (1, 1), (0, 0)))


def avg_pool_2x2_s2(x_nhwc):
    # assumes even H, W (true for this configuration)
    N, H, W, C = x_nhwc.shape
    return x_nhwc.reshape(N, H // 2, 2, W // 2, 2, C).mean(axis=(2, 4))


# ---------------------------------------------------------------------------
# Parameter preparation: fold BN, transpose/pad/cast weights ONCE.
# ---------------------------------------------------------------------------
def bn_scale_bias(bn_params, eps=1e-5):
    gamma, beta, mean, var = bn_params
    scale = gamma / jnp.sqrt(var + eps)
    bias = beta - mean * scale
    return scale.astype(jnp.float32), bias.astype(jnp.float32)


def _prep_conv(w_oihw, stride, pad, in_bn=None, pro_relu=False,
               out_bn=None, epi_relu=False):
    cout, cin, kh, kw = w_oihw.shape
    K = kh * kw * cin
    Kp = _round_up(K, LANE)
    Np = _round_up(cout, LANE)
    w_mat = jnp.transpose(w_oihw, (2, 3, 1, 0)).reshape(K, cout).astype(jnp.float32)

    b_out_p = None
    if out_bn is not None:
        s, b = bn_scale_bias(out_bn)
        w_mat = w_mat * s[None, :]        # fold epilogue BN scale into W columns
        b_out_p = jnp.zeros((1, Np), jnp.float32).at[0, :cout].set(b)

    w_p = jnp.zeros((Kp, Np), jnp.bfloat16).at[:K, :cout].set(
        w_mat.astype(jnp.bfloat16))

    s_in_p = b_in_p = None
    if in_bn is not None:
        assert kh == 1 and kw == 1        # prologue BN only used before 1x1 convs
        s, b = bn_scale_bias(in_bn)
        s_in_p = jnp.zeros((1, Kp), jnp.float32).at[0, :K].set(s)
        b_in_p = jnp.zeros((1, Kp), jnp.float32).at[0, :K].set(b)

    return dict(w=w_p, kh=kh, kw=kw, cout=cout, stride=stride, pad=pad,
                s_in=s_in_p, b_in=b_in_p, b_out=b_out_p,
                pro_relu=pro_relu, epi_relu=epi_relu)


def prepare_params(params):
    pp = {'conv0': _prep_conv(params['conv0'], stride=2, pad=3,
                              out_bn=params['norm0'], epi_relu=True)}
    blocks = []
    for block in params['blocks']:
        layers = []
        for layer in block['layers']:
            layers.append({
                # BN1+ReLU prologue, 1x1 conv, BN2+ReLU epilogue (scale folded)
                'conv1': _prep_conv(layer['conv1'], 1, 0,
                                    in_bn=layer['bn1'], pro_relu=True,
                                    out_bn=layer['bn2'], epi_relu=True),
                # plain 3x3 conv, pad 1
                'conv2': _prep_conv(layer['conv2'], 1, 1),
            })
        nb = {'layers': layers}
        if 'transition' in block:
            nb['transition'] = _prep_conv(block['transition']['conv'], 1, 0,
                                          in_bn=block['transition']['bn'],
                                          pro_relu=True)
        blocks.append(nb)
    pp['blocks'] = blocks
    s5, b5 = bn_scale_bias(params['norm5'])
    pp['norm5_scale'], pp['norm5_bias'] = s5, b5
    pp['fc_w'] = params['fc_w'].astype(jnp.float32)
    pp['fc_b'] = params['fc_b'].astype(jnp.float32)
    return pp


# ---------------------------------------------------------------------------
# DenseNet forward
# ---------------------------------------------------------------------------
def conv_apply(x_nhwc, cp):
    cols, (N, Ho, Wo) = im2col(x_nhwc, cp['kh'], cp['kw'], cp['stride'], cp['pad'])
    y = fused_matmul(cols, cp['w'],
                     s_in=cp['s_in'], b_in=cp['b_in'], b_out=cp['b_out'],
                     pro_relu=cp['pro_relu'], epi_relu=cp['epi_relu'],
                     n_out=cp['cout'], out_dtype=jnp.bfloat16)
    return y.reshape(N, Ho, Wo, cp['cout'])


def dense_layer(x, layer):
    mid = conv_apply(x, layer['conv1'])     # BN1+ReLU -> 1x1 -> BN2+ReLU (fused)
    new = conv_apply(mid, layer['conv2'])   # 3x3, pad 1
    return jnp.concatenate([x, new], axis=-1)


def densenet_forward(x_nchw, pp):
    x = jnp.transpose(x_nchw, (0, 2, 3, 1)).astype(jnp.bfloat16)  # NCHW -> NHWC bf16
    x = conv_apply(x, pp['conv0'])          # 7x7 s2 p3 + norm0 + relu0 (fused)
    x = max_pool_3x3_s2_p1(x)
    for block in pp['blocks']:
        for layer in block['layers']:
            x = dense_layer(x, layer)
        if 'transition' in block:
            x = avg_pool_2x2_s2(conv_apply(x, block['transition']))
    # norm5 + final ReLU + adaptive avg pool (1,1) + flatten (elementwise glue, f32)
    xf = x.astype(jnp.float32) * pp['norm5_scale'] + pp['norm5_bias']
    xf = jnp.maximum(xf, 0.0)
    feat = xf.mean(axis=(1, 2))             # (N, C)
    # classifier: (2, C) x (C, 10) — plain dot (pallas launch/padding > the math)
    return jnp.dot(feat, pp['fc_w']) + pp['fc_b']


# ---------------------------------------------------------------------------
# Deterministic parameter construction (mirrors the module's __init__ shapes)
# ---------------------------------------------------------------------------
def init_params(key, growth_rate=8, num_init_features=16, block_config=(2, 2),
                num_classes=10, bn_size=2):
    def conv_w(k, cout, cin, kh, kw):
        fan_in = cin * kh * kw
        std = math.sqrt(2.0 / fan_in)  # kaiming_normal_
        return jax.random.normal(k, (cout, cin, kh, kw), jnp.float32) * std

    def bn_p(c):
        # (gamma=1, beta=0, running_mean=0, running_var=1)
        return (jnp.ones((c,), jnp.float32), jnp.zeros((c,), jnp.float32),
                jnp.zeros((c,), jnp.float32), jnp.ones((c,), jnp.float32))

    keys = iter(jax.random.split(key, 64))
    params = {
        'conv0': conv_w(next(keys), num_init_features, 3, 7, 7),
        'norm0': bn_p(num_init_features),
    }
    num_features = num_init_features
    blocks = []
    for i, num_layers in enumerate(block_config):
        layers = []
        nf = num_features
        for _ in range(num_layers):
            layers.append({
                'bn1': bn_p(nf),
                'conv1': conv_w(next(keys), bn_size * growth_rate, nf, 1, 1),
                'bn2': bn_p(bn_size * growth_rate),
                'conv2': conv_w(next(keys), growth_rate, bn_size * growth_rate, 3, 3),
            })
            nf += growth_rate
        num_features = nf
        block = {'layers': layers}
        if i != len(block_config) - 1:
            block['transition'] = {
                'bn': bn_p(num_features),
                'conv': conv_w(next(keys), num_features // 2, num_features, 1, 1),
            }
            num_features //= 2
        blocks.append(block)
    params['blocks'] = blocks
    params['norm5'] = bn_p(num_features)
    params['fc_w'] = jax.random.normal(next(keys), (num_features, num_classes),
                                       jnp.float32) * 0.01
    params['fc_b'] = jnp.zeros((num_classes,), jnp.float32)
    return params


if __name__ == "__main__":
    key = jax.random.PRNGKey(0)
    kx, kp = jax.random.split(key)
    # small DenseNet: growth_rate=8, init_features=16, blocks=(2, 2), 10 classes
    params = init_params(kp, growth_rate=8, num_init_features=16,
                         block_config=(2, 2), num_classes=10, bn_size=2)
    prepped = prepare_params(params)          # fold BN, pad/cast weights once
    x = jax.random.normal(kx, (2, 3, 32, 32), jnp.float32)  # NCHW like PyTorch

    fwd = jax.jit(lambda inp: densenet_forward(inp, prepped))
    out = fwd(x)
    jax.block_until_ready(out)
    assert out.shape == (2, 10), out.shape
    assert jnp.all(jnp.isfinite(out))
    print("KERNEL_OK")
</pallas_src>

<mosaic_0001>
module attributes {stable_mosaic.version = 11 : i64} {
  func.func @_mm_kernel_single(%arg0: i32, %arg1: i32, %arg2: memref<256x256xbf16, #tpu.memory_space<vmem>>, %arg3: memref<256x128xbf16, #tpu.memory_space<vmem>>, %arg4: memref<1x128xf32, #tpu.memory_space<vmem>>, %arg5: memref<256x128xbf16, #tpu.memory_space<vmem>>) attributes {dimension_semantics = [#tpu.dimension_semantics<parallel>, #tpu.dimension_semantics<parallel>], iteration_bounds = array<i64: 2, 1>, scalar_prefetch = 0 : i64, scratch_operands = 0 : i64, tpu.core_type = #tpu.core_type<tc>, window_params = [{transform_indices = @transform_0, window_bounds = array<i64: 256, 256>}, {transform_indices = @transform_1, window_bounds = array<i64: 256, 128>}, {transform_indices = @transform_2, window_bounds = array<i64: 1, 128>}, {transform_indices = @transform_3, window_bounds = array<i64: 256, 128>}]} {
    %c0 = arith.constant 0 : index
    %c0_0 = arith.constant 0 : index
    %0 = vector.load %arg2[%c0, %c0_0] : memref<256x256xbf16, #tpu.memory_space<vmem>>, vector<256x256xbf16>
    %c0_1 = arith.constant 0 : index
    %c0_2 = arith.constant 0 : index
    %1 = vector.load %arg3[%c0_1, %c0_2] : memref<256x128xbf16, #tpu.memory_space<vmem>>, vector<256x128xbf16>
    %cst = arith.constant dense<0.000000e+00> : vector<256x128xf32>
    %2 = tpu.matmul %0, %1, %cst {dimension_numbers = #tpu.dot_dimension_numbers<[1], [0], [0], [1], [0, 0, 1, 1], [], []>} : vector<256x256xbf16>, vector<256x128xbf16>, vector<256x128xf32> -> vector<256x128xf32>
    %c0_3 = arith.constant 0 : index
    %c0_4 = arith.constant 0 : index
    %3 = vector.load %arg4[%c0_3, %c0_4] : memref<1x128xf32, #tpu.memory_space<vmem>>, vector<1x128xf32>
    %4 = vector.broadcast %3 : vector<1x128xf32> to vector<256x128xf32>
    %5 = arith.addf %2, %4 : vector<256x128xf32>
    %cst_5 = arith.constant 0.000000e+00 : f32
    %6 = vector.broadcast %cst_5 : f32 to vector<256x128xf32>
    %7 = arith.maximumf %5, %6 : vector<256x128xf32>
    %8 = arith.truncf %7 : vector<256x128xf32> to vector<256x128xbf16>
    %c0_6 = arith.constant 0 : index
    %c0_7 = arith.constant 0 : index
    %9 = vector.load %arg5[%c0_6, %c0_7] : memref<256x128xbf16, #tpu.memory_space<vmem>>, vector<256x128xbf16>
    tpu.vector_store %arg5[%c0_6, %c0_7], %8 {strides = array<i32>} : memref<256x128xbf16, #tpu.memory_space<vmem>>, vector<256x128xbf16>,
    return
  }
  func.func @transform_0(%arg0: i32, %arg1: i32) -> (i32, i32) {
    %c0_i32 = arith.constant 0 : i32
    %c0_i32_0 = arith.constant 0 : i32
    return %arg0, %c0_i32 : i32, i32
  }
  func.func @transform_1(%arg0: i32, %arg1: i32) -> (i32, i32) {
    %c0_i32 = arith.constant 0 : i32
    %c0_i32_0 = arith.constant 0 : i32
    return %c0_i32, %arg1 : i32, i32
  }
  func.func @transform_2(%arg0: i32, %arg1: i32) -> (i32, i32) {
    %c0_i32 = arith.constant 0 : i32
    %c0_i32_0 = arith.constant 0 : i32
    return %c0_i32, %arg1 : i32, i32
  }
  func.func @transform_3(%arg0: i32, %arg1: i32) -> (i32, i32) {
    %c0_i32 = arith.constant 0 : i32
    return %arg0, %arg1 : i32, i32
  }
}

module attributes {stable_mosaic.version = 11 : i64} {
  func.func @_mm_kernel_single(%arg0: i32, %arg1: i32, %arg2: memref<128x128xbf16, #tpu.memory_space<vmem>>, %arg3: memref<1x128xf32, #tpu.memory_space<vmem>>, %arg4: memref<1x128xf32, #tpu.memory_space<vmem>>, %arg5: memref<128x128xbf16, #tpu.memory_space<vmem>>, %arg6: memref<1x128xf32, #tpu.memory_space<vmem>>, %arg7: memref<128x128xbf16, #tpu.memory_space<vmem>>) attributes {dimension_semantics = [#tpu.dimension_semantics<parallel>, #tpu.dimension_semantics<parallel>], iteration_bounds = array<i64: 1, 1>, scalar_prefetch = 0 : i64, scratch_operands = 0 : i64, tpu.core_type = #tpu.core_type<tc>, window_params = [{transform_indices = @transform_0, window_bounds = array<i64: 128, 128>}, {pipeline_mode = #tpu.pipeline_mode<synchronous>, transform_indices = @transform_1, window_bounds = array<i64: 1, 128>}, {pipeline_mode = #tpu.pipeline_mode<synchronous>, transform_indices = @transform_2, window_bounds = array<i64: 1, 128>}, {transform_indices = @transform_3, window_bounds = array<i64: 128, 128>}, {transform_indices = @transform_4, window_bounds = array<i64: 1, 128>}, {transform_indices = @transform_5, window_bounds = array<i64: 128, 128>}]} {
    %c0 = arith.constant 0 : index
    %c0_0 = arith.constant 0 : index
    %0 = vector.load %arg2[%c0, %c0_0] : memref<128x128xbf16, #tpu.memory_space<vmem>>, vector<128x128xbf16>
    %1 = arith.extf %0 : vector<128x128xbf16> to vector<128x128xf32>
    %c0_1 = arith.constant 0 : index
    %c0_2 = arith.constant 0 : index
    %2 = vector.load %arg3[%c0_1, %c0_2] : memref<1x128xf32, #tpu.memory_space<vmem>>, vector<1x128xf32>
    %3 = vector.broadcast %2 : vector<1x128xf32> to vector<128x128xf32>
    %4 = arith.mulf %1, %3 : vector<128x128xf32>
    %c0_3 = arith.constant 0 : index
    %c0_4 = arith.constant 0 : index
    %5 = vector.load %arg4[%c0_3, %c0_4] : memref<1x128xf32, #tpu.memory_space<vmem>>, vector<1x128xf32>
    %6 = vector.broadcast %5 : vector<1x128xf32> to vector<128x128xf32>
    %7 = arith.addf %4, %6 : vector<128x128xf32>
    %cst = arith.constant 0.000000e+00 : f32
    %8 = vector.broadcast %cst : f32 to vector<128x128xf32>
    %9 = arith.maximumf %7, %8 : vector<128x128xf32>
    %10 = arith.truncf %9 : vector<128x128xf32> to vector<128x128xbf16>
    %c0_5 = arith.constant 0 : index
    %c0_6 = arith.constant 0 : index
    %11 = vector.load %arg5[%c0_5, %c0_6] : memref<128x128xbf16, #tpu.memory_space<vmem>>, vector<128x128xbf16>
    %cst_7 = arith.constant dense<0.000000e+00> : vector<128x128xf32>
    %12 = tpu.matmul %10, %11, %cst_7 {dimension_numbers = #tpu.dot_dimension_numbers<[1], [0], [0], [1], [0, 0, 1, 1], [], []>} : vector<128x128xbf16>, vector<128x128xbf16>, vector<128x128xf32> -> vector<128x128xf32>
    %c0_8 = arith.constant 0 : index
    %c0_9 = arith.constant 0 : index
    %13 = vector.load %arg6[%c0_8, %c0_9] : memref<1x128xf32, #tpu.memory_space<vmem>>, vector<1x128xf32>
    %14 = vector.broadcast %13 : vector<1x128xf32> to vector<128x128xf32>
    %15 = arith.addf %12, %14 : vector<128x128xf32>
    %cst_10 = arith.constant 0.000000e+00 : f32
    %16 = vector.broadcast %cst_10 : f32 to vector<128x128xf32>
    %17 = arith.maximumf %15, %16 : vector<128x128xf32>
    %18 = arith.truncf %17 : vector<128x128xf32> to vector<128x128xbf16>
    %c0_11 = arith.constant 0 : index
    %c0_12 = arith.constant 0 : index
    %19 = vector.load %arg7[%c0_11, %c0_12] : memref<128x128xbf16, #tpu.memory_space<vmem>>, vector<128x128xbf16>
    tpu.vector_store %arg7[%c0_11, %c0_12], %18 {strides = array<i32>} : memref<128x128xbf16, #tpu.memory_space<vmem>>, vector<128x128xbf16>,
    return
  }
  func.func @transform_0(%arg0: i32, %arg1: i32) -> (i32, i32) {
    %c0_i32 = arith.constant 0 : i32
    %c0_i32_0 = arith.constant 0 : i32
    return %arg0, %c0_i32 : i32, i32
  }
  func.func @transform_1(%arg0: i32, %arg1: i32) -> (i32, i32) {
    %c0_i32 = arith.constant 0 : i32
    %c0_i32_0 = arith.constant 0 : i32
    %c0_i32_1 = arith.constant 0 : i32
    return %c0_i32, %c0_i32_0 : i32, i32
  }
  func.func @transform_2(%arg0: i32, %arg1: i32) -> (i32, i32) {
    %c0_i32 = arith.constant 0 : i32
    %c0_i32_0 = arith.constant 0 : i32
    %c0_i32_1 = arith.constant 0 : i32
    return %c0_i32, %c0_i32_0 : i32, i32
  }
  func.func @transform_3(%arg0: i32, %arg1: i32) -> (i32, i32) {
    %c0_i32 = arith.constant 0 : i32
    %c0_i32_0 = arith.constant 0 : i32
    return %c0_i32, %arg1 : i32, i32
  }
  func.func @transform_4(%arg0: i32, %arg1: i32) -> (i32, i32) {
    %c0_i32 = arith.constant 0 : i32
    %c0_i32_0 = arith.constant 0 : i32
    return %c0_i32, %arg1 : i32, i32
  }
  func.func @transform_5(%arg0: i32, %arg1: i32) -> (i32, i32) {
    %c0_i32 = arith.constant 0 : i32
    return %arg0, %arg1 : i32, i32
  }
}

module attributes {stable_mosaic.version = 11 : i64} {
  func.func @_mm_kernel_single(%arg0: i32, %arg1: i32, %arg2: memref<128x256xbf16, #tpu.memory_space<vmem>>, %arg3: memref<256x128xbf16, #tpu.memory_space<vmem>>, %arg4: memref<128x128xbf16, #tpu.memory_space<vmem>>) attributes {dimension_semantics = [#tpu.dimension_semantics<parallel>, #tpu.dimension_semantics<parallel>], iteration_bounds = array<i64: 1, 1>, scalar_prefetch = 0 : i64, scratch_operands = 0 : i64, tpu.core_type = #tpu.core_type<tc>, window_params = [{transform_indices = @transform_0, window_bounds = array<i64: 128, 256>}, {transform_indices = @transform_1, window_bounds = array<i64: 256, 128>}, {transform_indices = @transform_2, window_bounds = array<i64: 128, 128>}]} {
    %c0 = arith.constant 0 : index
    %c0_0 = arith.constant 0 : index
    %0 = vector.load %arg2[%c0, %c0_0] : memref<128x256xbf16, #tpu.memory_space<vmem>>, vector<128x256xbf16>
    %c0_1 = arith.constant 0 : index
    %c0_2 = arith.constant 0 : index
    %1 = vector.load %arg3[%c0_1, %c0_2] : memref<256x128xbf16, #tpu.memory_space<vmem>>, vector<256x128xbf16>
    %cst = arith.constant dense<0.000000e+00> : vector<128x128xf32>
    %2 = tpu.matmul %0, %1, %cst {dimension_numbers = #tpu.dot_dimension_numbers<[1], [0], [0], [1], [0, 0, 1, 1], [], []>} : vector<128x256xbf16>, vector<256x128xbf16>, vector<128x128xf32> -> vector<128x128xf32>
    %3 = arith.truncf %2 : vector<128x128xf32> to vector<128x128xbf16>
    %c0_3 = arith.constant 0 : index
    %c0_4 = arith.constant 0 : index
    %4 = vector.load %arg4[%c0_3, %c0_4] : memref<128x128xbf16, #tpu.memory_space<vmem>>, vector<128x128xbf16>
    tpu.vector_store %arg4[%c0_3, %c0_4], %3 {strides = array<i32>} : memref<128x128xbf16, #tpu.memory_space<vmem>>, vector<128x128xbf16>,
    return
  }
  func.func @transform_0(%arg0: i32, %arg1: i32) -> (i32, i32) {
    %c0_i32 = arith.constant 0 : i32
    %c0_i32_0 = arith.constant 0 : i32
    return %arg0, %c0_i32 : i32, i32
  }
  func.func @transform_1(%arg0: i32, %arg1: i32) -> (i32, i32) {
    %c0_i32 = arith.constant 0 : i32
    %c0_i32_0 = arith.constant 0 : i32
    return %c0_i32, %arg1 : i32, i32
  }
  func.func @transform_2(%arg0: i32, %arg1: i32) -> (i32, i32) {
    %c0_i32 = arith.constant 0 : i32
    return %arg0, %arg1 : i32, i32
  }
}

module attributes {stable_mosaic.version = 11 : i64} {
  func.func @_mm_kernel_single(%arg0: i32, %arg1: i32, %arg2: memref<128x128xbf16, #tpu.memory_space<vmem>>, %arg3: memref<1x128xf32, #tpu.memory_space<vmem>>, %arg4: memref<1x128xf32, #tpu.memory_space<vmem>>, %arg5: memref<128x128xbf16, #tpu.memory_space<vmem>>, %arg6: memref<128x128xbf16, #tpu.memory_space<vmem>>) attributes {dimension_semantics = [#tpu.dimension_semantics<parallel>, #tpu.dimension_semantics<parallel>], iteration_bounds = array<i64: 1, 1>, scalar_prefetch = 0 : i64, scratch_operands = 0 : i64, tpu.core_type = #tpu.core_type<tc>, window_params = [{transform_indices = @transform_0, window_bounds = array<i64: 128, 128>}, {pipeline_mode = #tpu.pipeline_mode<synchronous>, transform_indices = @transform_1, window_bounds = array<i64: 1, 128>}, {pipeline_mode = #tpu.pipeline_mode<synchronous>, transform_indices = @transform_2, window_bounds = array<i64: 1, 128>}, {transform_indices = @transform_3, window_bounds = array<i64: 128, 128>}, {transform_indices = @transform_4, window_bounds = array<i64: 128, 128>}]} {
    %c0 = arith.constant 0 : index
    %c0_0 = arith.constant 0 : index
    %0 = vector.load %arg2[%c0, %c0_0] : memref<128x128xbf16, #tpu.memory_space<vmem>>, vector<128x128xbf16>
    %1 = arith.extf %0 : vector<128x128xbf16> to vector<128x128xf32>
    %c0_1 = arith.constant 0 : index
    %c0_2 = arith.constant 0 : index
    %2 = vector.load %arg3[%c0_1, %c0_2] : memref<1x128xf32, #tpu.memory_space<vmem>>, vector<1x128xf32>
    %3 = vector.broadcast %2 : vector<1x128xf32> to vector<128x128xf32>
    %4 = arith.mulf %1, %3 : vector<128x128xf32>
    %c0_3 = arith.constant 0 : index
    %c0_4 = arith.constant 0 : index
    %5 = vector.load %arg4[%c0_3, %c0_4] : memref<1x128xf32, #tpu.memory_space<vmem>>, vector<1x128xf32>
    %6 = vector.broadcast %5 : vector<1x128xf32> to vector<128x128xf32>
    %7 = arith.addf %4, %6 : vector<128x128xf32>
    %cst = arith.constant 0.000000e+00 : f32
    %8 = vector.broadcast %cst : f32 to vector<128x128xf32>
    %9 = arith.maximumf %7, %8 : vector<128x128xf32>
    %10 = arith.truncf %9 : vector<128x128xf32> to vector<128x128xbf16>
    %c0_5 = arith.constant 0 : index
    %c0_6 = arith.constant 0 : index
    %11 = vector.load %arg5[%c0_5, %c0_6] : memref<128x128xbf16, #tpu.memory_space<vmem>>, vector<128x128xbf16>
    %cst_7 = arith.constant dense<0.000000e+00> : vector<128x128xf32>
    %12 = tpu.matmul %10, %11, %cst_7 {dimension_numbers = #tpu.dot_dimension_numbers<[1], [0], [0], [1], [0, 0, 1, 1], [], []>} : vector<128x128xbf16>, vector<128x128xbf16>, vector<128x128xf32> -> vector<128x128xf32>
    %13 = arith.truncf %12 : vector<128x128xf32> to vector<128x128xbf16>
    %c0_8 = arith.constant 0 : index
    %c0_9 = arith.constant 0 : index
    %14 = vector.load %arg6[%c0_8, %c0_9] : memref<128x128xbf16, #tpu.memory_space<vmem>>, vector<128x128xbf16>
    tpu.vector_store %arg6[%c0_8, %c0_9], %13 {strides = array<i32>} : memref<128x128xbf16, #tpu.memory_space<vmem>>, vector<128x128xbf16>,
    return
  }
  func.func @transform_0(%arg0: i32, %arg1: i32) -> (i32, i32) {
    %c0_i32 = arith.constant 0 : i32
    %c0_i32_0 = arith.constant 0 : i32
    return %arg0, %c0_i32 : i32, i32
  }
  func.func @transform_1(%arg0: i32, %arg1: i32) -> (i32, i32) {
    %c0_i32 = arith.constant 0 : i32
    %c0_i32_0 = arith.constant 0 : i32
    %c0_i32_1 = arith.constant 0 : i32
    return %c0_i32, %c0_i32_0 : i32, i32
  }
  func.func @transform_2(%arg0: i32, %arg1: i32) -> (i32, i32) {
    %c0_i32 = arith.constant 0 : i32
    %c0_i32_0 = arith.constant 0 : i32
    %c0_i32_1 = arith.constant 0 : i32
    return %c0_i32, %c0_i32_0 : i32, i32
  }
  func.func @transform_3(%arg0: i32, %arg1: i32) -> (i32, i32) {
    %c0_i32 = arith.constant 0 : i32
    %c0_i32_0 = arith.constant 0 : i32
    return %c0_i32, %arg1 : i32, i32
  }
  func.func @transform_4(%arg0: i32, %arg1: i32) -> (i32, i32) {
    %c0_i32 = arith.constant 0 : i32
    return %arg0, %arg1 : i32, i32
  }
}

module attributes {stable_mosaic.version = 11 : i64} {
  func.func @_mm_kernel_single(%arg0: i32, %arg1: i32, %arg2: memref<32x128xbf16, #tpu.memory_space<vmem>>, %arg3: memref<1x128xf32, #tpu.memory_space<vmem>>, %arg4: memref<1x128xf32, #tpu.memory_space<vmem>>, %arg5: memref<128x128xbf16, #tpu.memory_space<vmem>>, %arg6: memref<1x128xf32, #tpu.memory_space<vmem>>, %arg7: memref<32x128xbf16, #tpu.memory_space<vmem>>) attributes {dimension_semantics = [#tpu.dimension_semantics<parallel>, #tpu.dimension_semantics<parallel>], iteration_bounds = array<i64: 1, 1>, scalar_prefetch = 0 : i64, scratch_operands = 0 : i64, tpu.core_type = #tpu.core_type<tc>, window_params = [{transform_indices = @transform_0, window_bounds = array<i64: 32, 128>}, {pipeline_mode = #tpu.pipeline_mode<synchronous>, transform_indices = @transform_1, window_bounds = array<i64: 1, 128>}, {pipeline_mode = #tpu.pipeline_mode<synchronous>, transform_indices = @transform_2, window_bounds = array<i64: 1, 128>}, {transform_indices = @transform_3, window_bounds = array<i64: 128, 128>}, {transform_indices = @transform_4, window_bounds = array<i64: 1, 128>}, {transform_indices = @transform_5, window_bounds = array<i64: 32, 128>}]} {
    %c0 = arith.constant 0 : index
    %c0_0 = arith.constant 0 : index
    %0 = vector.load %arg2[%c0, %c0_0] : memref<32x128xbf16, #tpu.memory_space<vmem>>, vector<32x128xbf16>
    %1 = arith.extf %0 : vector<32x128xbf16> to vector<32x128xf32>
    %c0_1 = arith.constant 0 : index
    %c0_2 = arith.constant 0 : index
    %2 = vector.load %arg3[%c0_1, %c0_2] : memref<1x128xf32, #tpu.memory_space<vmem>>, vector<1x128xf32>
    %3 = vector.broadcast %2 : vector<1x128xf32> to vector<32x128xf32>
    %4 = arith.mulf %1, %3 : vector<32x128xf32>
    %c0_3 = arith.constant 0 : index
    %c0_4 = arith.constant 0 : index
    %5 = vector.load %arg4[%c0_3, %c0_4] : memref<1x128xf32, #tpu.memory_space<vmem>>, vector<1x128xf32>
    %6 = vector.broadcast %5 : vector<1x128xf32> to vector<32x128xf32>
    %7 = arith.addf %4, %6 : vector<32x128xf32>
    %cst = arith.constant 0.000000e+00 : f32
    %8 = vector.broadcast %cst : f32 to vector<32x128xf32>
    %9 = arith.maximumf %7, %8 : vector<32x128xf32>
    %10 = arith.truncf %9 : vector<32x128xf32> to vector<32x128xbf16>
    %c0_5 = arith.constant 0 : index
    %c0_6 = arith.constant 0 : index
    %11 = vector.load %arg5[%c0_5, %c0_6] : memref<128x128xbf16, #tpu.memory_space<vmem>>, vector<128x128xbf16>
    %cst_7 = arith.constant dense<0.000000e+00> : vector<32x128xf32>
    %12 = tpu.matmul %10, %11, %cst_7 {dimension_numbers = #tpu.dot_dimension_numbers<[1], [0], [0], [1], [0, 0, 1, 1], [], []>} : vector<32x128xbf16>, vector<128x128xbf16>, vector<32x128xf32> -> vector<32x128xf32>
    %c0_8 = arith.constant 0 : index
    %c0_9 = arith.constant 0 : index
    %13 = vector.load %arg6[%c0_8, %c0_9] : memref<1x128xf32, #tpu.memory_space<vmem>>, vector<1x128xf32>
    %14 = vector.broadcast %13 : vector<1x128xf32> to vector<32x128xf32>
    %15 = arith.addf %12, %14 : vector<32x128xf32>
    %cst_10 = arith.constant 0.000000e+00 : f32
    %16 = vector.broadcast %cst_10 : f32 to vector<32x128xf32>
    %17 = arith.maximumf %15, %16 : vector<32x128xf32>
    %18 = arith.truncf %17 : vector<32x128xf32> to vector<32x128xbf16>
    %c0_11 = arith.constant 0 : index
    %c0_12 = arith.constant 0 : index
    %19 = vector.load %arg7[%c0_11, %c0_12] : memref<32x128xbf16, #tpu.memory_space<vmem>>, vector<32x128xbf16>
    tpu.vector_store %arg7[%c0_11, %c0_12], %18 {strides = array<i32>} : memref<32x128xbf16, #tpu.memory_space<vmem>>, vector<32x128xbf16>,
    return
  }
  func.func @transform_0(%arg0: i32, %arg1: i32) -> (i32, i32) {
    %c0_i32 = arith.constant 0 : i32
    %c0_i32_0 = arith.constant 0 : i32
    return %arg0, %c0_i32 : i32, i32
  }
  func.func @transform_1(%arg0: i32, %arg1: i32) -> (i32, i32) {
    %c0_i32 = arith.constant 0 : i32
    %c0_i32_0 = arith.constant 0 : i32
    %c0_i32_1 = arith.constant 0 : i32
    return %c0_i32, %c0_i32_0 : i32, i32
  }
  func.func @transform_2(%arg0: i32, %arg1: i32) -> (i32, i32) {
    %c0_i32 = arith.constant 0 : i32
    %c0_i32_0 = arith.constant 0 : i32
    %c0_i32_1 = arith.constant 0 : i32
    return %c0_i32, %c0_i32_0 : i32, i32
  }
  func.func @transform_3(%arg0: i32, %arg1: i32) -> (i32, i32) {
    %c0_i32 = arith.constant 0 : i32
    %c0_i32_0 = arith.constant 0 : i32
    return %c0_i32, %arg1 : i32, i32
  }
  func.func @transform_4(%arg0: i32, %arg1: i32) -> (i32, i32) {
    %c0_i32 = arith.constant 0 : i32
    %c0_i32_0 = arith.constant 0 : i32
    return %c0_i32, %arg1 : i32, i32
  }
  func.func @transform_5(%arg0: i32, %arg1: i32) -> (i32, i32) {
    %c0_i32 = arith.constant 0 : i32
    return %arg0, %arg1 : i32, i32
  }
}

module attributes {stable_mosaic.version = 11 : i64} {
  func.func @_mm_kernel_single(%arg0: i32, %arg1: i32, %arg2: memref<32x256xbf16, #tpu.memory_space<vmem>>, %arg3: memref<256x128xbf16, #tpu.memory_space<vmem>>, %arg4: memref<32x128xbf16, #tpu.memory_space<vmem>>) attributes {dimension_semantics = [#tpu.dimension_semantics<parallel>, #tpu.dimension_semantics<parallel>], iteration_bounds = array<i64: 1, 1>, scalar_prefetch = 0 : i64, scratch_operands = 0 : i64, tpu.core_type = #tpu.core_type<tc>, window_params = [{transform_indices = @transform_0, window_bounds = array<i64: 32, 256>}, {transform_indices = @transform_1, window_bounds = array<i64: 256, 128>}, {transform_indices = @transform_2, window_bounds = array<i64: 32, 128>}]} {
    %c0 = arith.constant 0 : index
    %c0_0 = arith.constant 0 : index
    %0 = vector.load %arg2[%c0, %c0_0] : memref<32x256xbf16, #tpu.memory_space<vmem>>, vector<32x256xbf16>
    %c0_1 = arith.constant 0 : index
    %c0_2 = arith.constant 0 : index
    %1 = vector.load %arg3[%c0_1, %c0_2] : memref<256x128xbf16, #tpu.memory_space<vmem>>, vector<256x128xbf16>
    %cst = arith.constant dense<0.000000e+00> : vector<32x128xf32>
    %2 = tpu.matmul %0, %1, %cst {dimension_numbers = #tpu.dot_dimension_numbers<[1], [0], [0], [1], [0, 0, 1, 1], [], []>} : vector<32x256xbf16>, vector<256x128xbf16>, vector<32x128xf32> -> vector<32x128xf32>
    %3 = arith.truncf %2 : vector<32x128xf32> to vector<32x128xbf16>
    %c0_3 = arith.constant 0 : index
    %c0_4 = arith.constant 0 : index
    %4 = vector.load %arg4[%c0_3, %c0_4] : memref<32x128xbf16, #tpu.memory_space<vmem>>, vector<32x128xbf16>
    tpu.vector_store %arg4[%c0_3, %c0_4], %3 {strides = array<i32>} : memref<32x128xbf16, #tpu.memory_space<vmem>>, vector<32x128xbf16>,
    return
  }
  func.func @transform_0(%arg0: i32, %arg1: i32) -> (i32, i32) {
    %c0_i32 = arith.constant 0 : i32
    %c0_i32_0 = arith.constant 0 : i32
    return %arg0, %c0_i32 : i32, i32
  }
  func.func @transform_1(%arg0: i32, %arg1: i32) -> (i32, i32) {
    %c0_i32 = arith.constant 0 : i32
    %c0_i32_0 = arith.constant 0 : i32
    return %c0_i32, %arg1 : i32, i32
  }
  func.func @transform_2(%arg0: i32, %arg1: i32) -> (i32, i32) {
    %c0_i32 = arith.constant 0 : i32
    return %arg0, %arg1 : i32, i32
  }
}

</mosaic_0001>

<llo_original>
// kernel: _lambda_.11
$region0: #{_lambda_.11}
  #allocation0 [shape = 'u32[]', space=smem, size = 0x4, offset = 0x4, fixed_abs, tag = 'smem constant byte address 0x4 - core index']
  #allocation1 [shape = 'u32[144,128]{1,0:T(1,128)}', space=vmem, size = 0x12000, scoped, tag = 'internal scratch']
  %s0 = inlined_call_operand.vmem [shape: bf16[128,128], index: 0, kind: input, shape index: {}]
  %s1 = inlined_call_operand.vmem [shape: f32[1,128], index: 1, kind: input, shape index: {}]
  %s2 = inlined_call_operand.vmem [shape: f32[1,128], index: 2, kind: input, shape index: {}, may-alias: {2,4}]
  %s3 = inlined_call_operand.vmem [shape: bf16[128,128], index: 3, kind: input, shape index: {}]
  %s4 = inlined_call_operand.vmem [shape: f32[1,128], index: 4, kind: input, shape index: {}, may-alias: {2,4}]
  %s5 = inlined_call_operand.vmem [shape: bf16[128,128], index: 5, kind: output, shape index: {}]
  %s6 = sld [smem:[#allocation0]]
  $region30: #{_lambda_.11} parent=0
    _
  %s8 = ssub.s32 1, %s6
  %s9 = scalar_select 0, %s8, %s6
  // Predicated region
  $region2: #{_lambda_.11} parent=0 // pred_check
    _
  $region3: #{_lambda_.11} parent=0 // pred_check_branch
    %11 = sbr.rel (0) target = $region5
  $region4: #{_lambda_.11} parent=0 // pred_region
    _
  $region5: #{_lambda_.11} parent=0 // pred_fallthru
    _
  // Predicated region
  $region6: #{_lambda_.11} parent=0 // pred_check
    _
  $region7: #{_lambda_.11} parent=0 // pred_check_branch
    %13 = sbr.rel (0) target = $region9
  $region8: #{_lambda_.11} parent=0 // pred_region
    _
  $region9: #{_lambda_.11} parent=0 // pred_fallthru
    _
  // Predicated region
  $region10: #{_lambda_.11} parent=0 // pred_check
    _
  $region11: #{_lambda_.11} parent=0 // pred_check_branch
    %15 = sbr.rel (0) target = $region13
  $region12: #{_lambda_.11} parent=0 // pred_region
    _
  $region13: #{_lambda_.11} parent=0 // pred_fallthru
    _
  // Predicated region
  $region14: #{_lambda_.11} parent=0 // pred_check
    _
  $region15: #{_lambda_.11} parent=0 // pred_check_branch
    %17 = sbr.rel (0) target = $region17
  $region16: #{_lambda_.11} parent=0 // pred_region
    _
  $region17: #{_lambda_.11} parent=0 // pred_fallthru
    _
  // Predicated region
  $region18: #{_lambda_.11} parent=0 // pred_check
    _
  $region19: #{_lambda_.11} parent=0 // pred_check_branch
    %19 = sbr.rel (0) target = $region21
  $region20: #{_lambda_.11} parent=0 // pred_region
    _
  $region21: #{_lambda_.11} parent=0 // pred_fallthru
    _
  %v21 = vld [vmem:[%s0] sm:$0xf]
  %v22 = vld [vmem:[%s0 + $0x4] sm:$0xf]
  %v23 = vld [vmem:[%s0 + $0x8] sm:$0xf]
  %v24 = vld [vmem:[%s0 + $0xc] sm:$0xf]
  %v25 = vld [vmem:[%s0 + $0x10] sm:$0xf]
  %v26 = vld [vmem:[%s0 + $0x14] sm:$0xf]
  %v27 = vld [vmem:[%s0 + $0x18] sm:$0xf]
  %v28 = vld [vmem:[%s0 + $0x1c] sm:$0xf]
  %v29 = vld [vmem:[%s0 + $0x20] sm:$0xf]
  %v30 = vld [vmem:[%s0 + $0x24] sm:$0xf]
  %v31 = vld [vmem:[%s0 + $0x28] sm:$0xf]
  %v32 = vld [vmem:[%s0 + $0x2c] sm:$0xf]
  %v33 = vld [vmem:[%s0 + $0x30] sm:$0xf]
  %v34 = vld [vmem:[%s0 + $0x34] sm:$0xf]
  %v35 = vld [vmem:[%s0 + $0x38] sm:$0xf]
  %v36 = vld [vmem:[%s0 + $0x3c] sm:$0xf]
  %v37 = vunpack.c.l.bf16 %v21
  %v38 = vunpack.c.l.bf16 %v22
  %v39 = vunpack.c.l.bf16 %v23
  %v40 = vunpack.c.l.bf16 %v24
  %v41 = vunpack.c.l.bf16 %v25
  %v42 = vunpack.c.l.bf16 %v26
  %v43 = vunpack.c.l.bf16 %v27
  %v44 = vunpack.c.l.bf16 %v28
  %v45 = vunpack.c.l.bf16 %v29
  %v46 = vunpack.c.l.bf16 %v30
  %v47 = vunpack.c.l.bf16 %v31
  %v48 = vunpack.c.l.bf16 %v32
  %v49 = vunpack.c.l.bf16 %v33
  %v50 = vunpack.c.l.bf16 %v34
  %v51 = vunpack.c.l.bf16 %v35
  %v52 = vunpack.c.l.bf16 %v36
  %v53 = vld [vmem:[%s1] sm:$0x1]
  %v55 = vlaneseq
  %v56 = vshrl.u32 %v55, 7
  %v57 = vsub.s32 0, %v56
  %v58 = vrot.slane %v53, %v57
  %v60 = vmul.f32 %v37, %v58
  %v61 = vmul.f32 %v38, %v58
  %v62 = vmul.f32 %v39, %v58
  %v63 = vmul.f32 %v40, %v58
  %v64 = vmul.f32 %v41, %v58
  %v65 = vmul.f32 %v42, %v58
  %v66 = vmul.f32 %v43, %v58
  %v67 = vmul.f32 %v44, %v58
  %v68 = vmul.f32 %v45, %v58
  %v69 = vmul.f32 %v46, %v58
  %v70 = vmul.f32 %v47, %v58
  %v71 = vmul.f32 %v48, %v58
  %v72 = vmul.f32 %v49, %v58
  %v73 = vmul.f32 %v50, %v58
  %v74 = vmul.f32 %v51, %v58
  %v75 = vmul.f32 %v52, %v58
  %v76 = vld [vmem:[%s2] sm:$0x1]
  %v78 = vlaneseq
  %v79 = vshrl.u32 %v78, 7
  %v80 = vsub.s32 0, %v79
  %v81 = vrot.slane %v76, %v80
  %v83 = vadd.f32 %v60, %v81
  %v84 = vadd.f32 %v61, %v81
  %v85 = vadd.f32 %v62, %v81
  %v86 = vadd.f32 %v63, %v81
  %v87 = vadd.f32 %v64, %v81
  %v88 = vadd.f32 %v65, %v81
  %v89 = vadd.f32 %v66, %v81
  %v90 = vadd.f32 %v67, %v81
  %v91 = vadd.f32 %v68, %v81
  %v92 = vadd.f32 %v69, %v81
  %v93 = vadd.f32 %v70, %v81
  %v94 = vadd.f32 %v71, %v81
  %v95 = vadd.f32 %v72, %v81
  %v96 = vadd.f32 %v73, %v81
  %v97 = vadd.f32 %v74, %v81
  %v98 = vadd.f32 %v75, %v81
  %v99 = vmax.f32 %v83, 0.0
  %v100 = vmax.f32 %v84, 0.0
  %v101 = vmax.f32 %v85, 0.0
  %v102 = vmax.f32 %v86, 0.0
  %v103 = vmax.f32 %v87, 0.0
  %v104 = vmax.f32 %v88, 0.0
  %v105 = vmax.f32 %v89, 0.0
  %v106 = vmax.f32 %v90, 0.0
  %v107 = vmax.f32 %v91, 0.0
  %v108 = vmax.f32 %v92, 0.0
  %v109 = vmax.f32 %v93, 0.0
  %v110 = vmax.f32 %v94, 0.0
  %v111 = vmax.f32 %v95, 0.0
  %v112 = vmax.f32 %v96, 0.0
  %v113 = vmax.f32 %v97, 0.0
  %v114 = vmax.f32 %v98, 0.0
  %v115 = vpack.c.bf16 %v100, %v99
  %v116 = vpack.c.bf16 %v102, %v101
  %v117 = vpack.c.bf16 %v104, %v103
  %v118 = vpack.c.bf16 %v106, %v105
  %v119 = vpack.c.bf16 %v108, %v107
  %v120 = vpack.c.bf16 %v110, %v109
  %v121 = vpack.c.bf16 %v112, %v111
  %v122 = vpack.c.bf16 %v114, %v113
  %v123 = vld [vmem:[%s3] sm:$0xf]
  %v124 = vld [vmem:[%s3 + $0x4] sm:$0xf]
  %v125 = vld [vmem:[%s3 + $0x8] sm:$0xf]
  %v126 = vld [vmem:[%s3 + $0xc] sm:$0xf]
  %v127 = vld [vmem:[%s3 + $0x10] sm:$0xf]
  %v128 = vld [vmem:[%s3 + $0x14] sm:$0xf]
  %v129 = vld [vmem:[%s3 + $0x18] sm:$0xf]
  %v130 = vld [vmem:[%s3 + $0x1c] sm:$0xf]
  %v131 = vld [vmem:[%s3 + $0x20] sm:$0xf]
  %v132 = vld [vmem:[%s3 + $0x24] sm:$0xf]
  %v133 = vld [vmem:[%s3 + $0x28] sm:$0xf]
  %v134 = vld [vmem:[%s3 + $0x2c] sm:$0xf]
  %v135 = vld [vmem:[%s3 + $0x30] sm:$0xf]
  %v136 = vld [vmem:[%s3 + $0x34] sm:$0xf]
  %v137 = vld [vmem:[%s3 + $0x38] sm:$0xf]
  %v138 = vld [vmem:[%s3 + $0x3c] sm:$0xf]
  %v139 = vld [vmem:[%s4] sm:$0x1]
  %v141 = vlaneseq
  %v142 = vshrl.u32 %v141, 7
  %v143 = vsub.s32 0, %v142
  %v144 = vrot.slane %v139, %v143
  %v162 = vunpack.c.l.b16 %v123
  %v163 = vunpack.c.l.b16 %v124
  %v164 = vunpack.c.l.b16 %v125
  %v165 = vunpack.c.l.b16 %v126
  %v166 = vunpack.c.l.b16 %v127
  %v167 = vunpack.c.l.b16 %v128
  %v168 = vunpack.c.l.b16 %v129
  %v169 = vunpack.c.l.b16 %v130
  %v170 = vunpack.c.l.b16 %v131
  %v171 = vunpack.c.l.b16 %v132
  %v172 = vunpack.c.l.b16 %v133
  %v173 = vunpack.c.l.b16 %v134
  %v174 = vunpack.c.l.b16 %v135
  %v175 = vunpack.c.l.b16 %v136
  %v176 = vunpack.c.l.b16 %v137
  %v177 = vunpack.c.l.b16 %v138
  %v178 = vpack.c.b16 %v163, %v162
  %v179 = vpack.c.b16 %v165, %v164
  %v180 = vpack.c.b16 %v167, %v166
  %v181 = vpack.c.b16 %v169, %v168
  %v182 = vpack.c.b16 %v171, %v170
  %v183 = vpack.c.b16 %v173, %v172
  %v184 = vpack.c.b16 %v175, %v174
  %v185 = vpack.c.b16 %v177, %v176
  %194 = vmatprep.subr.bf16.mxu0 0
  %195 = vmatpush1.bf16.msra.mxu0 %v178
  %196 = vmatprep.subr.bf16.mxu0 0
  %197 = vmatpush1.bf16.msra.mxu0 %v179
  %198 = vmatprep.subr.bf16.mxu0 0
  %199 = vmatpush1.bf16.msra.mxu0 %v180
  %200 = vmatprep.subr.bf16.mxu0 0
  %201 = vmatpush1.bf16.msra.mxu0 %v181
  %202 = vmatprep.subr.bf16.mxu0 0
  %203 = vmatpush1.bf16.msra.mxu0 %v182
  %204 = vmatprep.subr.bf16.mxu0 0
  %205 = vmatpush1.bf16.msra.mxu0 %v183
  %206 = vmatprep.subr.bf16.mxu0 0
  %207 = vmatpush1.bf16.msra.mxu0 %v184
  %208 = vmatprep.subr.bf16.mxu0 0
  %209 = vmatpush1.bf16.msra.mxu0 %v185
  %210 = vmatprep.subr.bf16.mxu0 0
  %211 = vmatpush1.bf16.msra.mxu0 0
  %212 = vmatprep.subr.bf16.mxu0 0
  %213 = vmatpush1.bf16.msra.mxu0 0
  %214 = vmatprep.subr.bf16.mxu0 0
  %215 = vmatpush1.bf16.msra.mxu0 0
  %216 = vmatprep.subr.bf16.mxu0 0
  %217 = vmatpush1.bf16.msra.mxu0 0
  %218 = vmatprep.subr.bf16.mxu0 0
  %219 = vmatpush1.bf16.msra.mxu0 0
  %220 = vmatprep.subr.bf16.mxu0 0
  %221 = vmatpush1.bf16.msra.mxu0 0
  %222 = vmatprep.subr.bf16.mxu0 0
  %223 = vmatpush1.bf16.msra.mxu0 0
  %224 = vmatprep.subr.bf16.mxu0 0
  %225 = vmatpush1.bf16.msra.mxu0 0
  %226 = vmatprep.mubr.bf16.mxu0 0
  %227 = vmatmul.mubr.bf16.gmra.mrb[0].mxu0 %v115
  %v228 = vpop.f32.mrb[0].mxu0
  %v229 = vadd.f32 %v144, %v228
  %v230 = vpop.f32.mrb[0].mxu0
  %v231 = vpop.f32.mrb[0].mxu0
  %v232 = vadd.f32 %v144, %v231
  %v233 = vpop.f32.mrb[0].mxu0
  %234 = vmatprep.mubr.bf16.mxu0 0
  %235 = vmatmul.mubr.bf16.gmra.mrb[0].mxu0 %v116
  %v236 = vpop.f32.mrb[0].mxu0
  %v237 = vadd.f32 %v144, %v236
  %v238 = vpop.f32.mrb[0].mxu0
  %v239 = vpop.f32.mrb[0].mxu0
  %v240 = vadd.f32 %v144, %v239
  %v241 = vpop.f32.mrb[0].mxu0
  %242 = vmatprep.mubr.bf16.mxu0 0
  %243 = vmatmul.mubr.bf16.gmra.mrb[0].mxu0 %v117
  %v244 = vpop.f32.mrb[0].mxu0
  %v245 = vadd.f32 %v144, %v244
  %v246 = vpop.f32.mrb[0].mxu0
  %v247 = vpop.f32.mrb[0].mxu0
  %v248 = vadd.f32 %v144, %v247
  %v249 = vpop.f32.mrb[0].mxu0
  %250 = vmatprep.mubr.bf16.mxu0 0
  %251 = vmatmul.mubr.bf16.gmra.mrb[0].mxu0 %v118
  %v252 = vpop.f32.mrb[0].mxu0
  %v253 = vadd.f32 %v144, %v252
  %v254 = vpop.f32.mrb[0].mxu0
  %v255 = vpop.f32.mrb[0].mxu0
  %v256 = vadd.f32 %v144, %v255
  %v257 = vpop.f32.mrb[0].mxu0
  %258 = vmatprep.mubr.bf16.mxu0 0
  %259 = vmatmul.mubr.bf16.gmra.mrb[0].mxu0 %v119
  %v260 = vpop.f32.mrb[0].mxu0
  %v261 = vadd.f32 %v144, %v260
  %v262 = vpop.f32.mrb[0].mxu0
  %v263 = vpop.f32.mrb[0].mxu0
  %v264 = vadd.f32 %v144, %v263
  %v265 = vpop.f32.mrb[0].mxu0
  %266 = vmatprep.mubr.bf16.mxu0 0
  %267 = vmatmul.mubr.bf16.gmra.mrb[0].mxu0 %v120
  %v268 = vpop.f32.mrb[0].mxu0
  %v269 = vadd.f32 %v144, %v268
  %v270 = vpop.f32.mrb[0].mxu0
  %v271 = vpop.f32.mrb[0].mxu0
  %v272 = vadd.f32 %v144, %v271
  %v273 = vpop.f32.mrb[0].mxu0
  %274 = vmatprep.mubr.bf16.mxu0 0
  %275 = vmatmul.mubr.bf16.gmra.mrb[0].mxu0 %v121
  %v276 = vpop.f32.mrb[0].mxu0
  %v277 = vadd.f32 %v144, %v276
  %v278 = vpop.f32.mrb[0].mxu0
  %v279 = vpop.f32.mrb[0].mxu0
  %v280 = vadd.f32 %v144, %v279
  %v281 = vpop.f32.mrb[0].mxu0
  %282 = vmatprep.mubr.bf16.mxu0 0
  %283 = vmatmul.mubr.bf16.gmra.mrb[0].mxu0 %v122
  %v284 = vpop.f32.mrb[0].mxu0
  %v285 = vadd.f32 %v144, %v284
  %v286 = vpop.f32.mrb[0].mxu0
  %v287 = vpop.f32.mrb[0].mxu0
  %v288 = vadd.f32 %v144, %v287
  %v289 = vpop.f32.mrb[0].mxu0
  %290 = vdwg.mxu0
  %v291 = vmax.f32 %v229, 0.0
  %v292 = vmax.f32 %v232, 0.0
  %v293 = vmax.f32 %v237, 0.0
  %v294 = vmax.f32 %v240, 0.0
  %v295 = vmax.f32 %v245, 0.0
  %v296 = vmax.f32 %v248, 0.0
  %v297 = vmax.f32 %v253, 0.0
  %v298 = vmax.f32 %v256, 0.0
  %v299 = vmax.f32 %v261, 0.0
  %v300 = vmax.f32 %v264, 0.0
  %v301 = vmax.f32 %v269, 0.0
  %v302 = vmax.f32 %v272, 0.0
  %v303 = vmax.f32 %v277, 0.0
  %v304 = vmax.f32 %v280, 0.0
  %v305 = vmax.f32 %v285, 0.0
  %v306 = vmax.f32 %v288, 0.0
  %v307 = vpack.c.bf16 %v292, %v291
  %v308 = vpack.c.bf16 %v294, %v293
  %v309 = vpack.c.bf16 %v296, %v295
  %v310 = vpack.c.bf16 %v298, %v297
  %v311 = vpack.c.bf16 %v300, %v299
  %v312 = vpack.c.bf16 %v302, %v301
  %v313 = vpack.c.bf16 %v304, %v303
  %v314 = vpack.c.bf16 %v306, %v305
  %v323 = vunpack.c.l.b16 %v307
  %v324 = vunpack.c.h.b16 %v307
  %v325 = vunpack.c.l.b16 %v308
  %v326 = vunpack.c.h.b16 %v308
  %v327 = vunpack.c.l.b16 %v309
  %v328 = vunpack.c.h.b16 %v309
  %v329 = vunpack.c.l.b16 %v310
  %v330 = vunpack.c.h.b16 %v310
  %v331 = vunpack.c.l.b16 %v311
  %v332 = vunpack.c.h.b16 %v311
  %v333 = vunpack.c.l.b16 %v312
  %v334 = vunpack.c.h.b16 %v312
  %v335 = vunpack.c.l.b16 %v313
  %v336 = vunpack.c.h.b16 %v313
  %v337 = vunpack.c.l.b16 %v314
  %v338 = vunpack.c.h.b16 %v314
  %v339 = vpack.c.b16 %v323, %v323
  %v340 = vpack.c.b16 %v324, %v324
  %v341 = vpack.c.b16 %v325, %v325
  %v342 = vpack.c.b16 %v326, %v326
  %v343 = vpack.c.b16 %v327, %v327
  %v344 = vpack.c.b16 %v328, %v328
  %v345 = vpack.c.b16 %v329, %v329
  %v346 = vpack.c.b16 %v330, %v330
  %v347 = vpack.c.b16 %v331, %v331
  %v348 = vpack.c.b16 %v332, %v332
  %v349 = vpack.c.b16 %v333, %v333
  %v350 = vpack.c.b16 %v334, %v334
  %v351 = vpack.c.b16 %v335, %v335
  %v352 = vpack.c.b16 %v336, %v336
  %v353 = vpack.c.b16 %v337, %v337
  %v354 = vpack.c.b16 %v338, %v338
  %371 = vst [vmem:[%s5] sm:$0xf] %v339
  %372 = vst [vmem:[%s5 + $0x4] sm:$0xf] %v340
  %373 = vst [vmem:[%s5 + $0x8] sm:$0xf] %v341
  %374 = vst [vmem:[%s5 + $0xc] sm:$0xf] %v342
  %375 = vst [vmem:[%s5 + $0x10] sm:$0xf] %v343
  %376 = vst [vmem:[%s5 + $0x14] sm:$0xf] %v344
  %377 = vst [vmem:[%s5 + $0x18] sm:$0xf] %v345
  %378 = vst [vmem:[%s5 + $0x1c] sm:$0xf] %v346
  %379 = vst [vmem:[%s5 + $0x20] sm:$0xf] %v347
  %380 = vst [vmem:[%s5 + $0x24] sm:$0xf] %v348
  %381 = vst [vmem:[%s5 + $0x28] sm:$0xf] %v349
  %382 = vst [vmem:[%s5 + $0x2c] sm:$0xf] %v350
  %383 = vst [vmem:[%s5 + $0x30] sm:$0xf] %v351
  %384 = vst [vmem:[%s5 + $0x34] sm:$0xf] %v352
  %385 = vst [vmem:[%s5 + $0x38] sm:$0xf] %v353
  %386 = vst [vmem:[%s5 + $0x3c] sm:$0xf] %v354
  // Predicated region
  $region22: #{_lambda_.11} parent=0 // pred_check
    _
  $region23: #{_lambda_.11} parent=0 // pred_check_branch
    %388 = sbr.rel (0) target = $region25
  $region24: #{_lambda_.11} parent=0 // pred_region
    _
  $region25: #{_lambda_.11} parent=0 // pred_fallthru
    _
  // Predicated region
  $region26: #{_lambda_.11} parent=0 // pred_check
    _
  $region27: #{_lambda_.11} parent=0 // pred_check_branch
    %390 = sbr.rel (0) target = $region29
  $region28: #{_lambda_.11} parent=0 // pred_region
    _
  $region29: #{_lambda_.11} parent=0 // pred_fallthru
    _

// kernel: _lambda_.10
$region0: #{_lambda_.10}
  #allocation0 [shape = 'u32[]', space=smem, size = 0x4, offset = 0x4, fixed_abs, tag = 'smem constant byte address 0x4 - core index']
  #allocation1 [shape = 'u32[144,128]{1,0:T(1,128)}', space=vmem, size = 0x12000, scoped, tag = 'internal scratch']
  %s0 = inlined_call_operand.vmem [shape: bf16[512,256], index: 0, kind: input, shape index: {}]
  %s1 = inlined_call_operand.vmem [shape: bf16[256,128], index: 1, kind: input, shape index: {}]
  %s2 = inlined_call_operand.vmem [shape: f32[1,128], index: 2, kind: input, shape index: {}]
  %s3 = inlined_call_operand.vmem [shape: bf16[512,128], index: 3, kind: output, shape index: {}]
  %s4 = sld [smem:[#allocation0]]
  $region45: #{_lambda_.10} parent=0
    _
  %s6 = ssub.s32 1, %s4
  %s7 = scalar_select 0, %s6, %s4
  loop: start=0, step=1, limit=4
  $region2: #{_lambda_.10} parent=0 // loop_pre_header
    _
  $region3: #{_lambda_.10} parent=0 // loop_header
    %s9 = sphi 0, %s13
    %p10 = scmp.ge.s32.totalorder %s9, 4
    %s16 = sphi 0, %s28
    %s17 = sphi 0, %s24
    %s18 = sphi 0, %s16
    %s19 = sphi 0, %s17
    %s20 = sphi 0, %s18
    %s21 = sphi 0, %s19
    %s31 = sphi 0, %s33
    %s34 = sphi 0, %s31
    %s35 = sphi 0, %s34
    %s51 = sphi 0, %s35
    %s57 = sphi 0, %s59
    %s60 = sphi 0, %s57
    %s61 = sphi 0, %s60
    %s77 = sphi 0, %s61
    %s83 = sphi 0, %s85
    %s86 = sphi 0, %s83
    %s87 = sphi 0, %s86
    %s103 = sphi 0, %s87
    %s111 = sphi 0, %s113
    %s114 = sphi 0, %s111
    %s115 = sphi 0, %s114
    %s131 = sphi 0, %s115
  $region4: #{_lambda_.10} parent=0 // loop_header_branch
    %12 = sbr.rel (%p10) target = $region8
  $region5: #{_lambda_.10} parent=0 // loop_body
    %s14 = ssub.s32 %s9, 1
    %s15 = ssub.s32 %s9, 2
    %s22 = sadd.s32 1, %s17
    %p23 = scmp.ge.s32.totalorder %s22, 1
    %s24 = scalar_select %p23, 0, %s22
    %s25 = sadd.s32 1, %s16
    %s26 = scalar_select %p23, %s25, %s16
    %p27 = scmp.ge.s32.totalorder %s26, 2
    %s28 = scalar_select %p27, 0, %s26
    %s29 = ssub.s32 %s16, %s28
    %p30 = scmp.eq.s32.totalorder %s29, 0
    %s32 = sadd.s32 %s31, 1
    %s33 = scalar_select %p30, %s31, %s32
    %p36 = pneg %p30
    %p37 = scmp.eq.s32.totalorder %s9, 1
    %p38 = por %p36, %p37
    %p39 = scmp.ne.s32.totalorder %s31, %s34
    %p40 = scmp.eq.s32.totalorder %s9, 0
    %p41 = por %p39, %p40
    %p42 = scmp.ne.s32.totalorder %s31, %s34
    %p43 = scmp.eq.s32.totalorder %s14, 1
    %p44 = por %p42, %p43
    %p45 = scmp.ne.s32.totalorder %s34, %s35
    %p46 = scmp.eq.s32.totalorder %s14, 0
    %p47 = por %p45, %p46
    %p48 = scmp.ne.s32.totalorder %s34, %s35
    %p49 = scmp.eq.s32.totalorder %s15, 1
    %p50 = por %p48, %p49
    %p52 = scmp.ne.s32.totalorder %s35, %s51
    %p53 = scmp.eq.s32.totalorder %s15, 0
    %p54 = por %p52, %p53
    %s55 = ssub.s32 %s17, %s24
    %p56 = scmp.eq.s32.totalorder %s55, 0
    %s58 = sadd.s32 %s57, 1
    %s59 = scalar_select %p56, %s57, %s58
    %p62 = pneg %p56
    %p63 = scmp.eq.s32.totalorder %s9, 1
    %p64 = por %p62, %p63
    %p65 = scmp.ne.s32.totalorder %s57, %s60
    %p66 = scmp.eq.s32.totalorder %s9, 0
    %p67 = por %p65, %p66
    %p68 = scmp.ne.s32.totalorder %s57, %s60
    %p69 = scmp.eq.s32.totalorder %s14, 1
    %p70 = por %p68, %p69
    %p71 = scmp.ne.s32.totalorder %s60, %s61
    %p72 = scmp.eq.s32.totalorder %s14, 0
    %p73 = por %p71, %p72
    %p74 = scmp.ne.s32.totalorder %s60, %s61
    %p75 = scmp.eq.s32.totalorder %s15, 1
    %p76 = por %p74, %p75
    %p78 = scmp.ne.s32.totalorder %s61, %s77
    %p79 = scmp.eq.s32.totalorder %s15, 0
    %p80 = por %p78, %p79
    %s81 = ssub.s32 %s17, %s24
    %p82 = scmp.eq.s32.totalorder %s81, 0
    %s84 = sadd.s32 %s83, 1
    %s85 = scalar_select %p82, %s83, %s84
    %p88 = pneg %p82
    %p89 = scmp.eq.s32.totalorder %s9, 1
    %p90 = por %p88, %p89
    %p91 = scmp.ne.s32.totalorder %s83, %s86
    %p92 = scmp.eq.s32.totalorder %s9, 0
    %p93 = por %p91, %p92
    %p94 = scmp.ne.s32.totalorder %s83, %s86
    %p95 = scmp.eq.s32.totalorder %s14, 1
    %p96 = por %p94, %p95
    %p97 = scmp.ne.s32.totalorder %s86, %s87
    %p98 = scmp.eq.s32.totalorder %s14, 0
    %p99 = por %p97, %p98
    %p100 = scmp.ne.s32.totalorder %s86, %s87
    %p101 = scmp.eq.s32.totalorder %s15, 1
    %p102 = por %p100, %p101
    %p104 = scmp.ne.s32.totalorder %s87, %s103
    %p105 = scmp.eq.s32.totalorder %s15, 0
    %p106 = por %p104, %p105
    %s107 = ssub.s32 %s16, %s28
    %s108 = ssub.s32 %s17, %s24
    %s109 = sor.u32 %s107, %s108
    %p110 = scmp.eq.s32.totalorder %s109, 0
    %s112 = sadd.s32 %s111, 1
    %s113 = scalar_select %p110, %s111, %s112
    %p116 = pneg %p110
    %p117 = scmp.eq.s32.totalorder %s9, 1
    %p118 = por %p116, %p117
    %p119 = scmp.ne.s32.totalorder %s111, %s114
    %p120 = scmp.eq.s32.totalorder %s9, 0
    %p121 = por %p119, %p120
    %p122 = scmp.ne.s32.totalorder %s111, %s114
    %p123 = scmp.eq.s32.totalorder %s14, 1
    %p124 = por %p122, %p123
    %p125 = scmp.ne.s32.totalorder %s114, %s115
    %p126 = scmp.eq.s32.totalorder %s14, 0
    %p127 = por %p125, %p126
    %p128 = scmp.ne.s32.totalorder %s114, %s115
    %p129 = scmp.eq.s32.totalorder %s15, 1
    %p130 = por %p128, %p129
    %p132 = scmp.ne.s32.totalorder %s115, %s131
    %p133 = scmp.eq.s32.totalorder %s15, 0
    %p134 = por %p132, %p133
    %p135 = scmp.le.s32.totalorder 1, %s9
    %p136 = scmp.lt.s32.totalorder %s9, 3
    %p137 = pnand %p135, %p136
    %p138 = pneg %p137
    // Predicated region
    $region9: #{_lambda_.10} parent=5 // pred_check
      _
    $region10: #{_lambda_.10} parent=5 // pred_check_branch
      %140 = sbr.rel (%p137) target = $region12
    $region11: #{_lambda_.10} parent=5 // pred_region
      %s141 = ssub.s32 %s9, 1
      // Predicated region
      $region13: #{_lambda_.10} parent=11 // pred_check
        %p142 = pneg %p73
      $region14: #{_lambda_.10} parent=11 // pred_check_branch
        %144 = sbr.rel (%p142) target = $region16
      $region15: #{_lambda_.10} parent=11 // pred_region
        %p145 = scmp.lt.s32.totalorder %s19, 0
        %s146 = scalar_select %p145, %s19, 0
        %s147 = smul.addr %s146, 4
        %s148 = scalar_lea.vmem %s1, %s147
      $region16: #{_lambda_.10} parent=11 // pred_fallthru
        _
      // Predicated region
      $region17: #{_lambda_.10} parent=11 // pred_check
        %p149 = pneg %p99
      $region18: #{_lambda_.10} parent=11 // pred_check_branch
        %151 = sbr.rel (%p149) target = $region20
      $region19: #{_lambda_.10} parent=11 // pred_region
        %p152 = scmp.lt.s32.totalorder %s19, 0
        %s153 = scalar_select %p152, %s19, 0
        %s154 = scalar_lea.vmem %s2, %s153
      $region20: #{_lambda_.10} parent=11 // pred_fallthru
        _
    $region12: #{_lambda_.10} parent=5 // pred_fallthru
      _
    %p155 = scmp.lt.s32.totalorder %s9, 2
    // Predicated region
    $region21: #{_lambda_.10} parent=5 // pred_check
      %p156 = pneg %p155
    $region22: #{_lambda_.10} parent=5 // pred_check_branch
      %158 = sbr.rel (%p156) target = $region24
    $region23: #{_lambda_.10} parent=5 // pred_region
      // Predicated region
      $region25: #{_lambda_.10} parent=23 // pred_check
        %p159 = pneg %p41
      $region26: #{_lambda_.10} parent=23 // pred_check_branch
        %161 = sbr.rel (%p159) target = $region28
      $region27: #{_lambda_.10} parent=23 // pred_region
        %s162 = smul.u32 32, %s16
        %p163 = scmp.lt.s32.totalorder %s162, 63
        %s164 = scalar_select %p163, %s162, 63
        %s165 = smul.addr %s164, 2
        %s166 = smul.addr %s165, 4
        %s167 = scalar_lea.vmem %s0, %s166
        %s168 = smul.u32 32, %s16
      $region28: #{_lambda_.10} parent=23 // pred_fallthru
        _
    $region24: #{_lambda_.10} parent=5 // pred_fallthru
      _
    %p169 = scmp.le.s32.totalorder 1, %s9
    %p170 = scmp.lt.s32.totalorder %s9, 3
    %p171 = pnand %p169, %p170
    %p172 = pneg %p171
    // Predicated region
    $region29: #{_lambda_.10} parent=5 // pred_check
      _
    $region30: #{_lambda_.10} parent=5 // pred_check_branch
      %174 = sbr.rel (%p171) target = $region32
    $region31: #{_lambda_.10} parent=5 // pred_region
      %s175 = ssub.s32 %s9, 1
      %s176 = smul.u32 32, %s18
      %p177 = scmp.lt.s32.totalorder %s176, 63
      %s178 = scalar_select %p177, %s176, 63
      %s179 = smul.addr %s178, 2
      %s180 = smul.addr %s179, 4
      %s181 = scalar_lea.vmem %s0, %s180
      %p182 = pneg %p47
      %p183 = pneg %p44
      %p184 = scmp.lt.s32.totalorder %s19, 0
      %s185 = scalar_select %p184, %s19, 0
      %s186 = smul.addr %s185, 4
      %s187 = scalar_lea.vmem %s1, %s186
      %p188 = pneg %p73
      %p189 = pneg %p70
      %p190 = scmp.lt.s32.totalorder %s19, 0
      %s191 = scalar_select %p190, %s19, 0
      %s192 = scalar_lea.vmem %s2, %s191
      %p193 = pneg %p99
      %p194 = pneg %p96
      %p195 = pneg %p127
      %p196 = pneg %p124
      %s197 = smul.u32 32, %s18
      %p198 = scmp.lt.s32.totalorder %s197, 63
      %s199 = scalar_select %p198, %s197, 63
      %p200 = scmp.lt.s32.totalorder %s19, 0
      %s201 = scalar_select %p200, %s19, 0
      %s202 = sadd.s32 %s201, %s199
      %s203 = smul.addr %s202, 4
      %s204 = scalar_lea.vmem %s3, %s203
      %s205 = smul.u32 32, %s18
      %p206 = scmp.lt.s32.totalorder %s205, 63
      %s207 = scalar_select %p206, %s205, 63
      %s208 = smul.addr %s207, 2
      %s209 = smul.addr %s208, 4
      %s210 = scalar_lea.vmem %s0, %s209
      %s211 = smul.u32 32, %s18
      %p212 = scmp.lt.s32.totalorder %s19, 0
      %s213 = scalar_select %p212, %s19, 0
      %s214 = smul.addr %s213, 4
      %s215 = scalar_lea.vmem %s1, %s214
      %p216 = scmp.lt.s32.totalorder %s19, 0
      %s217 = scalar_select %p216, %s19, 0
      %s218 = scalar_lea.vmem %s2, %s217
      %s219 = smul.u32 32, %s18
      %p220 = scmp.lt.s32.totalorder %s219, 63
      %s221 = scalar_select %p220, %s219, 63
      %p222 = scmp.lt.s32.totalorder %s19, 0
      %s223 = scalar_select %p222, %s19, 0
      %s224 = sadd.s32 %s223, %s221
      %s225 = smul.addr %s224, 4
      %s226 = scalar_lea.vmem %s3, %s225
      %s227 = smul.u32 32, %s18
      %v229 = vld [vmem:[%s210] sm:$0xff]
      %v230 = vld [vmem:[%s210 + $0x8] sm:$0xff]
      %v231 = vld [vmem:[%s210 + $0x10] sm:$0xff]
      %v232 = vld [vmem:[%s210 + $0x18] sm:$0xff]
      %v233 = vld [vmem:[%s210 + $0x20] sm:$0xff]
      %v234 = vld [vmem:[%s210 + $0x28] sm:$0xff]
      %v235 = vld [vmem:[%s210 + $0x30] sm:$0xff]
      %v236 = vld [vmem:[%s210 + $0x38] sm:$0xff]
      %v237 = vld [vmem:[%s210 + $0x40] sm:$0xff]
      %v238 = vld [vmem:[%s210 + $0x48] sm:$0xff]
      %v239 = vld [vmem:[%s210 + $0x50] sm:$0xff]
      %v240 = vld [vmem:[%s210 + $0x58] sm:$0xff]
      %v241 = vld [vmem:[%s210 + $0x60] sm:$0xff]
      %v242 = vld [vmem:[%s210 + $0x68] sm:$0xff]
      %v243 = vld [vmem:[%s210 + $0x70] sm:$0xff]
      %v244 = vld [vmem:[%s210 + $0x78] sm:$0xff]
      %v245 = vld [vmem:[%s210 + $0x80] sm:$0xff]
      %v246 = vld [vmem:[%s210 + $0x88] sm:$0xff]
      %v247 = vld [vmem:[%s210 + $0x90] sm:$0xff]
      %v248 = vld [vmem:[%s210 + $0x98] sm:$0xff]
      %v249 = vld [vmem:[%s210 + $0xa0] sm:$0xff]
      %v250 = vld [vmem:[%s210 + $0xa8] sm:$0xff]
      %v251 = vld [vmem:[%s210 + $0xb0] sm:$0xff]
      %v252 = vld [vmem:[%s210 + $0xb8] sm:$0xff]
      %v253 = vld [vmem:[%s210 + $0xc0] sm:$0xff]
      %v254 = vld [vmem:[%s210 + $0xc8] sm:$0xff]
      %v255 = vld [vmem:[%s210 + $0xd0] sm:$0xff]
      %v256 = vld [vmem:[%s210 + $0xd8] sm:$0xff]
      %v257 = vld [vmem:[%s210 + $0xe0] sm:$0xff]
      %v258 = vld [vmem:[%s210 + $0xe8] sm:$0xff]
      %v259 = vld [vmem:[%s210 + $0xf0] sm:$0xff]
      %v260 = vld [vmem:[%s210 + $0xf8] sm:$0xff]
      %v261 = vld [vmem:[%s215] sm:$0xf]
      %v262 = vld [vmem:[%s215 + $0x4] sm:$0xf]
      %v263 = vld [vmem:[%s215 + $0x8] sm:$0xf]
      %v264 = vld [vmem:[%s215 + $0xc] sm:$0xf]
      %v265 = vld [vmem:[%s215 + $0x10] sm:$0xf]
      %v266 = vld [vmem:[%s215 + $0x14] sm:$0xf]
      %v267 = vld [vmem:[%s215 + $0x18] sm:$0xf]
      %v268 = vld [vmem:[%s215 + $0x1c] sm:$0xf]
      %v269 = vld [vmem:[%s215 + $0x20] sm:$0xf]
      %v270 = vld [vmem:[%s215 + $0x24] sm:$0xf]
      %v271 = vld [vmem:[%s215 + $0x28] sm:$0xf]
      %v272 = vld [vmem:[%s215 + $0x2c] sm:$0xf]
      %v273 = vld [vmem:[%s215 + $0x30] sm:$0xf]
      %v274 = vld [vmem:[%s215 + $0x34] sm:$0xf]
      %v275 = vld [vmem:[%s215 + $0x38] sm:$0xf]
      %v276 = vld [vmem:[%s215 + $0x3c] sm:$0xf]
      %v277 = vld [vmem:[%s215 + $0x40] sm:$0xf]
      %v278 = vld [vmem:[%s215 + $0x44] sm:$0xf]
      %v279 = vld [vmem:[%s215 + $0x48] sm:$0xf]
      %v280 = vld [vmem:[%s215 + $0x4c] sm:$0xf]
      %v281 = vld [vmem:[%s215 + $0x50] sm:$0xf]
      %v282 = vld [vmem:[%s215 + $0x54] sm:$0xf]
      %v283 = vld [vmem:[%s215 + $0x58] sm:$0xf]
      %v284 = vld [vmem:[%s215 + $0x5c] sm:$0xf]
      %v285 = vld [vmem:[%s215 + $0x60] sm:$0xf]
      %v286 = vld [vmem:[%s215 + $0x64] sm:$0xf]
      %v287 = vld [vmem:[%s215 + $0x68] sm:$0xf]
      %v288 = vld [vmem:[%s215 + $0x6c] sm:$0xf]
      %v289 = vld [vmem:[%s215 + $0x70] sm:$0xf]
      %v290 = vld [vmem:[%s215 + $0x74] sm:$0xf]
      %v291 = vld [vmem:[%s215 + $0x78] sm:$0xf]
      %v292 = vld [vmem:[%s215 + $0x7c] sm:$0xf]
      %v293 = vld [vmem:[%s218] sm:$0x1]
      %v295 = vlaneseq
      %v296 = vshrl.u32 %v295, 7
      %v297 = vsub.s32 0, %v296
      %v298 = vrot.slane %v293, %v297
      %v332 = vunpack.c.l.b16 %v229
      %v333 = vunpack.c.h.b16 %v229
      %v334 = vunpack.c.l.b16 %v230
      %v335 = vunpack.c.h.b16 %v230
      %v336 = vunpack.c.l.b16 %v231
      %v337 = vunpack.c.h.b16 %v231
      %v338 = vunpack.c.l.b16 %v232
      %v339 = vunpack.c.h.b16 %v232
      %v340 = vunpack.c.l.b16 %v233
      %v341 = vunpack.c.h.b16 %v233
      %v342 = vunpack.c.l.b16 %v234
      %v343 = vunpack.c.h.b16 %v234
      %v344 = vunpack.c.l.b16 %v235
      %v345 = vunpack.c.h.b16 %v235
      %v346 = vunpack.c.l.b16 %v236
      %v347 = vunpack.c.h.b16 %v236
      %v348 = vunpack.c.l.b16 %v237
      %v349 = vunpack.c.h.b16 %v237
      %v350 = vunpack.c.l.b16 %v238
      %v351 = vunpack.c.h.b16 %v238
      %v352 = vunpack.c.l.b16 %v239
      %v353 = vunpack.c.h.b16 %v239
      %v354 = vunpack.c.l.b16 %v240
      %v355 = vunpack.c.h.b16 %v240
      %v356 = vunpack.c.l.b16 %v241
      %v357 = vunpack.c.h.b16 %v241
      %v358 = vunpack.c.l.b16 %v242
      %v359 = vunpack.c.h.b16 %v242
      %v360 = vunpack.c.l.b16 %v243
      %v361 = vunpack.c.h.b16 %v243
      %v362 = vunpack.c.l.b16 %v244
      %v363 = vunpack.c.h.b16 %v244
      %v364 = vunpack.c.l.b16 %v245
      %v365 = vunpack.c.h.b16 %v245
      %v366 = vunpack.c.l.b16 %v246
      %v367 = vunpack.c.h.b16 %v246
      %v368 = vunpack.c.l.b16 %v247
      %v369 = vunpack.c.h.b16 %v247
      %v370 = vunpack.c.l.b16 %v248
      %v371 = vunpack.c.h.b16 %v248
      %v372 = vunpack.c.l.b16 %v249
      %v373 = vunpack.c.h.b16 %v249
      %v374 = vunpack.c.l.b16 %v250
      %v375 = vunpack.c.h.b16 %v250
      %v376 = vunpack.c.l.b16 %v251
      %v377 = vunpack.c.h.b16 %v251
      %v378 = vunpack.c.l.b16 %v252
      %v379 = vunpack.c.h.b16 %v252
      %v380 = vunpack.c.l.b16 %v253
      %v381 = vunpack.c.h.b16 %v253
      %v382 = vunpack.c.l.b16 %v254
      %v383 = vunpack.c.h.b16 %v254
      %v384 = vunpack.c.l.b16 %v255
      %v385 = vunpack.c.h.b16 %v255
      %v386 = vunpack.c.l.b16 %v256
      %v387 = vunpack.c.h.b16 %v256
      %v388 = vunpack.c.l.b16 %v257
      %v389 = vunpack.c.h.b16 %v257
      %v390 = vunpack.c.l.b16 %v258
      %v391 = vunpack.c.h.b16 %v258
      %v392 = vunpack.c.l.b16 %v259
      %v393 = vunpack.c.h.b16 %v259
      %v394 = vunpack.c.l.b16 %v260
      %v395 = vunpack.c.h.b16 %v260
      %v396 = vpack.c.b16 %v334, %v332
      %v397 = vpack.c.b16 %v335, %v333
      %v398 = vpack.c.b16 %v338, %v336
      %v399 = vpack.c.b16 %v339, %v337
      %v400 = vpack.c.b16 %v342, %v340
      %v401 = vpack.c.b16 %v343, %v341
      %v402 = vpack.c.b16 %v346, %v344
      %v403 = vpack.c.b16 %v347, %v345
      %v404 = vpack.c.b16 %v350, %v348
      %v405 = vpack.c.b16 %v351, %v349
      %v406 = vpack.c.b16 %v354, %v352
      %v407 = vpack.c.b16 %v355, %v353
      %v408 = vpack.c.b16 %v358, %v356
      %v409 = vpack.c.b16 %v359, %v357
      %v410 = vpack.c.b16 %v362, %v360
      %v411 = vpack.c.b16 %v363, %v361
      %v412 = vpack.c.b16 %v366, %v364
      %v413 = vpack.c.b16 %v367, %v365
      %v414 = vpack.c.b16 %v370, %v368
      %v415 = vpack.c.b16 %v371, %v369
      %v416 = vpack.c.b16 %v374, %v372
      %v417 = vpack.c.b16 %v375, %v373
      %v418 = vpack.c.b16 %v378, %v376
      %v419 = vpack.c.b16 %v379, %v377
      %v420 = vpack.c.b16 %v382, %v380
      %v421 = vpack.c.b16 %v383, %v381
      %v422 = vpack.c.b16 %v386, %v384
      %v423 = vpack.c.b16 %v387, %v385
      %v424 = vpack.c.b16 %v390, %v388
      %v425 = vpack.c.b16 %v391, %v389
      %v426 = vpack.c.b16 %v394, %v392
      %v427 = vpack.c.b16 %v395, %v393
      %v492 = vunpack.c.l.b16 %v261
      %v493 = vunpack.c.l.b16 %v262
      %v494 = vunpack.c.l.b16 %v263
      %v495 = vunpack.c.l.b16 %v264
      %v496 = vunpack.c.l.b16 %v265
      %v497 = vunpack.c.l.b16 %v266
      %v498 = vunpack.c.l.b16 %v267
      %v499 = vunpack.c.l.b16 %v268
      %v500 = vunpack.c.l.b16 %v269
      %v501 = vunpack.c.l.b16 %v270
      %v502 = vunpack.c.l.b16 %v271
      %v503 = vunpack.c.l.b16 %v272
      %v504 = vunpack.c.l.b16 %v273
      %v505 = vunpack.c.l.b16 %v274
      %v506 = vunpack.c.l.b16 %v275
      %v507 = vunpack.c.l.b16 %v276
      %v508 = vunpack.c.l.b16 %v277
      %v509 = vunpack.c.l.b16 %v278
      %v510 = vunpack.c.l.b16 %v279
      %v511 = vunpack.c.l.b16 %v280
      %v512 = vunpack.c.l.b16 %v281
      %v513 = vunpack.c.l.b16 %v282
      %v514 = vunpack.c.l.b16 %v283
      %v515 = vunpack.c.l.b16 %v284
      %v516 = vunpack.c.l.b16 %v285
      %v517 = vunpack.c.l.b16 %v286
      %v518 = vunpack.c.l.b16 %v287
      %v519 = vunpack.c.l.b16 %v288
      %v520 = vunpack.c.l.b16 %v289
      %v521 = vunpack.c.l.b16 %v290
      %v522 = vunpack.c.l.b16 %v291
      %v523 = vunpack.c.l.b16 %v292
      %v524 = vpack.c.b16 %v493, %v492
      %v525 = vpack.c.b16 %v495, %v494
      %v526 = vpack.c.b16 %v497, %v496
      %v527 = vpack.c.b16 %v499, %v498
      %v528 = vpack.c.b16 %v501, %v500
      %v529 = vpack.c.b16 %v503, %v502
      %v530 = vpack.c.b16 %v505, %v504
      %v531 = vpack.c.b16 %v507, %v506
      %v532 = vpack.c.b16 %v509, %v508
      %v533 = vpack.c.b16 %v511, %v510
      %v534 = vpack.c.b16 %v513, %v512
      %v535 = vpack.c.b16 %v515, %v514
      %v536 = vpack.c.b16 %v517, %v516
      %v537 = vpack.c.b16 %v519, %v518
      %v538 = vpack.c.b16 %v521, %v520
      %v539 = vpack.c.b16 %v523, %v522
      %556 = vmatprep.subr.bf16.mxu0 0
      %557 = vmatpush1.bf16.msra.mxu0 %v524
      %558 = vmatprep.subr.bf16.mxu0 0
      %559 = vmatpush1.bf16.msra.mxu0 %v525
      %560 = vmatprep.subr.bf16.mxu0 0
      %561 = vmatpush1.bf16.msra.mxu0 %v526
      %562 = vmatprep.subr.bf16.mxu0 0
      %563 = vmatpush1.bf16.msra.mxu0 %v527
      %564 = vmatprep.subr.bf16.mxu0 0
      %565 = vmatpush1.bf16.msra.mxu0 %v528
      %566 = vmatprep.subr.bf16.mxu0 0
      %567 = vmatpush1.bf16.msra.mxu0 %v529
      %568 = vmatprep.subr.bf16.mxu0 0
      %569 = vmatpush1.bf16.msra.mxu0 %v530
      %570 = vmatprep.subr.bf16.mxu0 0
      %571 = vmatpush1.bf16.msra.mxu0 %v531
      %572 = vmatprep.subr.bf16.mxu0 0
      %573 = vmatpush1.bf16.msra.mxu0 %v532
      %574 = vmatprep.subr.bf16.mxu0 0
      %575 = vmatpush1.bf16.msra.mxu0 %v533
      %576 = vmatprep.subr.bf16.mxu0 0
      %577 = vmatpush1.bf16.msra.mxu0 %v534
      %578 = vmatprep.subr.bf16.mxu0 0
      %579 = vmatpush1.bf16.msra.mxu0 %v535
      %580 = vmatprep.subr.bf16.mxu0 0
      %581 = vmatpush1.bf16.msra.mxu0 %v536
      %582 = vmatprep.subr.bf16.mxu0 0
      %583 = vmatpush1.bf16.msra.mxu0 %v537
      %584 = vmatprep.subr.bf16.mxu0 0
      %585 = vmatpush1.bf16.msra.mxu0 %v538
      %586 = vmatprep.subr.bf16.mxu0 0
      %587 = vmatpush1.bf16.msra.mxu0 %v539
      %588 = vmatprep.mubr.bf16.mxu0 %v397
      %589 = vmatmul.mubr.bf16.gmra.mrb[0].mxu0 %v396
      %v590 = vpop.f32.mrb[0].mxu0
      %v591 = vadd.f32 %v298, %v590
      %v592 = vpop.f32.mrb[0].mxu0
      %v593 = vpop.f32.mrb[0].mxu0
      %v594 = vadd.f32 %v298, %v593
      %v595 = vpop.f32.mrb[0].mxu0
      %596 = vmatprep.mubr.bf16.mxu0 %v399
      %597 = vmatmul.mubr.bf16.gmra.mrb[0].mxu0 %v398
      %v598 = vpop.f32.mrb[0].mxu0
      %v599 = vadd.f32 %v298, %v598
      %v600 = vpop.f32.mrb[0].mxu0
      %v601 = vpop.f32.mrb[0].mxu0
      %v602 = vadd.f32 %v298, %v601
      %v603 = vpop.f32.mrb[0].mxu0
      %604 = vmatprep.mubr.bf16.mxu0 %v401
      %605 = vmatmul.mubr.bf16.gmra.mrb[0].mxu0 %v400
      %v606 = vpop.f32.mrb[0].mxu0
      %v607 = vadd.f32 %v298, %v606
      %v608 = vpop.f32.mrb[0].mxu0
      %v609 = vpop.f32.mrb[0].mxu0
      %v610 = vadd.f32 %v298, %v609
      %v611 = vpop.f32.mrb[0].mxu0
      %612 = vmatprep.mubr.bf16.mxu0 %v403
      %613 = vmatmul.mubr.bf16.gmra.mrb[0].mxu0 %v402
      %v614 = vpop.f32.mrb[0].mxu0
      %v615 = vadd.f32 %v298, %v614
      %v616 = vpop.f32.mrb[0].mxu0
      %v617 = vpop.f32.mrb[0].mxu0
      %v618 = vadd.f32 %v298, %v617
      %v619 = vpop.f32.mrb[0].mxu0
      %620 = vmatprep.mubr.bf16.mxu0 %v405
      %621 = vmatmul.mubr.bf16.gmra.mrb[0].mxu0 %v404
      %v622 = vpop.f32.mrb[0].mxu0
      %v623 = vadd.f32 %v298, %v622
      %v624 = vpop.f32.mrb[0].mxu0
      %v625 = vpop.f32.mrb[0].mxu0
      %v626 = vadd.f32 %v298, %v625
      %v627 = vpop.f32.mrb[0].mxu0
      %628 = vmatprep.mubr.bf16.mxu0 %v407
      %629 = vmatmul.mubr.bf16.gmra.mrb[0].mxu0 %v406
      %v630 = vpop.f32.mrb[0].mxu0
      %v631 = vadd.f32 %v298, %v630
      %v632 = vpop.f32.mrb[0].mxu0
      %v633 = vpop.f32.mrb[0].mxu0
      %v634 = vadd.f32 %v298, %v633
      %v635 = vpop.f32.mrb[0].mxu0
      %636 = vmatprep.mubr.bf16.mxu0 %v409
      %637 = vmatmul.mubr.bf16.gmra.mrb[0].mxu0 %v408
      %v638 = vpop.f32.mrb[0].mxu0
      %v639 = vadd.f32 %v298, %v638
      %v640 = vpop.f32.mrb[0].mxu0
      %v641 = vpop.f32.mrb[0].mxu0
      %v642 = vadd.f32 %v298, %v641
      %v643 = vpop.f32.mrb[0].mxu0
      %644 = vmatprep.mubr.bf16.mxu0 %v411
      %645 = vmatmul.mubr.bf16.gmra.mrb[0].mxu0 %v410
      %v646 = vpop.f32.mrb[0].mxu0
      %v647 = vadd.f32 %v298, %v646
      %v648 = vpop.f32.mrb[0].mxu0
      %v649 = vpop.f32.mrb[0].mxu0
      %v650 = vadd.f32 %v298, %v649
      %v651 = vpop.f32.mrb[0].mxu0
      %652 = vmatprep.mubr.bf16.mxu0 %v413
      %653 = vmatmul.mubr.bf16.gmra.mrb[0].mxu0 %v412
      %v654 = vpop.f32.mrb[0].mxu0
      %v655 = vadd.f32 %v298, %v654
      %v656 = vpop.f32.mrb[0].mxu0
      %v657 = vpop.f32.mrb[0].mxu0
      %v658 = vadd.f32 %v298, %v657
      %v659 = vpop.f32.mrb[0].mxu0
      %660 = vmatprep.mubr.bf16.mxu0 %v415
      %661 = vmatmul.mubr.bf16.gmra.mrb[0].mxu0 %v414
      %v662 = vpop.f32.mrb[0].mxu0
      %v663 = vadd.f32 %v298, %v662
      %v664 = vpop.f32.mrb[0].mxu0
      %v665 = vpop.f32.mrb[0].mxu0
      %v666 = vadd.f32 %v298, %v665
      %v667 = vpop.f32.mrb[0].mxu0
      %668 = vmatprep.mubr.bf16.mxu0 %v417
      %669 = vmatmul.mubr.bf16.gmra.mrb[0].mxu0 %v416
      %v670 = vpop.f32.mrb[0].mxu0
      %v671 = vadd.f32 %v298, %v670
      %v672 = vpop.f32.mrb[0].mxu0
      %v673 = vpop.f32.mrb[0].mxu0
      %v674 = vadd.f32 %v298, %v673
      %v675 = vpop.f32.mrb[0].mxu0
      %676 = vmatprep.mubr.bf16.mxu0 %v419
      %677 = vmatmul.mubr.bf16.gmra.mrb[0].mxu0 %v418
      %v678 = vpop.f32.mrb[0].mxu0
      %v679 = vadd.f32 %v298, %v678
      %v680 = vpop.f32.mrb[0].mxu0
      %v681 = vpop.f32.mrb[0].mxu0
      %v682 = vadd.f32 %v298, %v681
      %v683 = vpop.f32.mrb[0].mxu0
      %684 = vmatprep.mubr.bf16.mxu0 %v421
      %685 = vmatmul.mubr.bf16.gmra.mrb[0].mxu0 %v420
      %v686 = vpop.f32.mrb[0].mxu0
      %v687 = vadd.f32 %v298, %v686
      %v688 = vpop.f32.mrb[0].mxu0
      %v689 = vpop.f32.mrb[0].mxu0
      %v690 = vadd.f32 %v298, %v689
      %v691 = vpop.f32.mrb[0].mxu0
      %692 = vmatprep.mubr.bf16.mxu0 %v423
      %693 = vmatmul.mubr.bf16.gmra.mrb[0].mxu0 %v422
      %v694 = vpop.f32.mrb[0].mxu0
      %v695 = vadd.f32 %v298, %v694
      %v696 = vpop.f32.mrb[0].mxu0
      %v697 = vpop.f32.mrb[0].mxu0
      %v698 = vadd.f32 %v298, %v697
      %v699 = vpop.f32.mrb[0].mxu0
      %700 = vmatprep.mubr.bf16.mxu0 %v425
      %701 = vmatmul.mubr.bf16.gmra.mrb[0].mxu0 %v424
      %v702 = vpop.f32.mrb[0].mxu0
      %v703 = vadd.f32 %v298, %v702
      %v704 = vpop.f32.mrb[0].mxu0
      %v705 = vpop.f32.mrb[0].mxu0
      %v706 = vadd.f32 %v298, %v705
      %v707 = vpop.f32.mrb[0].mxu0
      %708 = vmatprep.mubr.bf16.mxu0 %v427
      %709 = vmatmul.mubr.bf16.gmra.mrb[0].mxu0 %v426
      %v710 = vpop.f32.mrb[0].mxu0
      %v711 = vadd.f32 %v298, %v710
      %v712 = vpop.f32.mrb[0].mxu0
      %v713 = vpop.f32.mrb[0].mxu0
      %v714 = vadd.f32 %v298, %v713
      %v715 = vpop.f32.mrb[0].mxu0
      %716 = vdwg.mxu0
      %v717 = vmax.f32 %v591, 0.0
      %v718 = vmax.f32 %v594, 0.0
      %v719 = vmax.f32 %v599, 0.0
      %v720 = vmax.f32 %v602, 0.0
      %v721 = vmax.f32 %v607, 0.0
      %v722 = vmax.f32 %v610, 0.0
      %v723 = vmax.f32 %v615, 0.0
      %v724 = vmax.f32 %v618, 0.0
      %v725 = vmax.f32 %v623, 0.0
      %v726 = vmax.f32 %v626, 0.0
      %v727 = vmax.f32 %v631, 0.0
      %v728 = vmax.f32 %v634, 0.0
      %v729 = vmax.f32 %v639, 0.0
      %v730 = vmax.f32 %v642, 0.0
      %v731 = vmax.f32 %v647, 0.0
      %v732 = vmax.f32 %v650, 0.0
      %v733 = vmax.f32 %v655, 0.0
      %v734 = vmax.f32 %v658, 0.0
      %v735 = vmax.f32 %v663, 0.0
      %v736 = vmax.f32 %v666, 0.0
      %v737 = vmax.f32 %v671, 0.0
      %v738 = vmax.f32 %v674, 0.0
      %v739 = vmax.f32 %v679, 0.0
      %v740 = vmax.f32 %v682, 0.0
      %v741 = vmax.f32 %v687, 0.0
      %v742 = vmax.f32 %v690, 0.0
      %v743 = vmax.f32 %v695, 0.0
      %v744 = vmax.f32 %v698, 0.0
      %v745 = vmax.f32 %v703, 0.0
      %v746 = vmax.f32 %v706, 0.0
      %v747 = vmax.f32 %v711, 0.0
      %v748 = vmax.f32 %v714, 0.0
      %v749 = vpack.c.bf16 %v718, %v717
      %v750 = vpack.c.bf16 %v720, %v719
      %v751 = vpack.c.bf16 %v722, %v721
      %v752 = vpack.c.bf16 %v724, %v723
      %v753 = vpack.c.bf16 %v726, %v725
      %v754 = vpack.c.bf16 %v728, %v727
      %v755 = vpack.c.bf16 %v730, %v729
      %v756 = vpack.c.bf16 %v732, %v731
      %v757 = vpack.c.bf16 %v734, %v733
      %v758 = vpack.c.bf16 %v736, %v735
      %v759 = vpack.c.bf16 %v738, %v737
      %v760 = vpack.c.bf16 %v740, %v739
      %v761 = vpack.c.bf16 %v742, %v741
      %v762 = vpack.c.bf16 %v744, %v743
      %v763 = vpack.c.bf16 %v746, %v745
      %v764 = vpack.c.bf16 %v748, %v747
      %v781 = vunpack.c.l.b16 %v749
      %v782 = vunpack.c.h.b16 %v749
      %v783 = vunpack.c.l.b16 %v750
      %v784 = vunpack.c.h.b16 %v750
      %v785 = vunpack.c.l.b16 %v751
      %v786 = vunpack.c.h.b16 %v751
      %v787 = vunpack.c.l.b16 %v752
      %v788 = vunpack.c.h.b16 %v752
      %v789 = vunpack.c.l.b16 %v753
      %v790 = vunpack.c.h.b16 %v753
      %v791 = vunpack.c.l.b16 %v754
      %v792 = vunpack.c.h.b16 %v754
      %v793 = vunpack.c.l.b16 %v755
      %v794 = vunpack.c.h.b16 %v755
      %v795 = vunpack.c.l.b16 %v756
      %v796 = vunpack.c.h.b16 %v756
      %v797 = vunpack.c.l.b16 %v757
      %v798 = vunpack.c.h.b16 %v757
      %v799 = vunpack.c.l.b16 %v758
      %v800 = vunpack.c.h.b16 %v758
      %v801 = vunpack.c.l.b16 %v759
      %v802 = vunpack.c.h.b16 %v759
      %v803 = vunpack.c.l.b16 %v760
      %v804 = vunpack.c.h.b16 %v760
      %v805 = vunpack.c.l.b16 %v761
      %v806 = vunpack.c.h.b16 %v761
      %v807 = vunpack.c.l.b16 %v762
      %v808 = vunpack.c.h.b16 %v762
      %v809 = vunpack.c.l.b16 %v763
      %v810 = vunpack.c.h.b16 %v763
      %v811 = vunpack.c.l.b16 %v764
      %v812 = vunpack.c.h.b16 %v764
      %v813 = vpack.c.b16 %v781, %v781
      %v814 = vpack.c.b16 %v782, %v782
      %v815 = vpack.c.b16 %v783, %v783
      %v816 = vpack.c.b16 %v784, %v784
      %v817 = vpack.c.b16 %v785, %v785
      %v818 = vpack.c.b16 %v786, %v786
      %v819 = vpack.c.b16 %v787, %v787
      %v820 = vpack.c.b16 %v788, %v788
      %v821 = vpack.c.b16 %v789, %v789
      %v822 = vpack.c.b16 %v790, %v790
      %v823 = vpack.c.b16 %v791, %v791
      %v824 = vpack.c.b16 %v792, %v792
      %v825 = vpack.c.b16 %v793, %v793
      %v826 = vpack.c.b16 %v794, %v794
      %v827 = vpack.c.b16 %v795, %v795
      %v828 = vpack.c.b16 %v796, %v796
      %v829 = vpack.c.b16 %v797, %v797
      %v830 = vpack.c.b16 %v798, %v798
      %v831 = vpack.c.b16 %v799, %v799
      %v832 = vpack.c.b16 %v800, %v800
      %v833 = vpack.c.b16 %v801, %v801
      %v834 = vpack.c.b16 %v802, %v802
      %v835 = vpack.c.b16 %v803, %v803
      %v836 = vpack.c.b16 %v804, %v804
      %v837 = vpack.c.b16 %v805, %v805
      %v838 = vpack.c.b16 %v806, %v806
      %v839 = vpack.c.b16 %v807, %v807
      %v840 = vpack.c.b16 %v808, %v808
      %v841 = vpack.c.b16 %v809, %v809
      %v842 = vpack.c.b16 %v810, %v810
      %v843 = vpack.c.b16 %v811, %v811
      %v844 = vpack.c.b16 %v812, %v812
      %877 = vst [vmem:[%s226] sm:$0xf] %v813
      %878 = vst [vmem:[%s226 + $0x4] sm:$0xf] %v814
      %879 = vst [vmem:[%s226 + $0x8] sm:$0xf] %v815
      %880 = vst [vmem:[%s226 + $0xc] sm:$0xf] %v816
      %881 = vst [vmem:[%s226 + $0x10] sm:$0xf] %v817
      %882 = vst [vmem:[%s226 + $0x14] sm:$0xf] %v818
      %883 = vst [vmem:[%s226 + $0x18] sm:$0xf] %v819
      %884 = vst [vmem:[%s226 + $0x1c] sm:$0xf] %v820
      %885 = vst [vmem:[%s226 + $0x20] sm:$0xf] %v821
      %886 = vst [vmem:[%s226 + $0x24] sm:$0xf] %v822
      %887 = vst [vmem:[%s226 + $0x28] sm:$0xf] %v823
      %888 = vst [vmem:[%s226 + $0x2c] sm:$0xf] %v824
      %889 = vst [vmem:[%s226 + $0x30] sm:$0xf] %v825
      %890 = vst [vmem:[%s226 + $0x34] sm:$0xf] %v826
      %891 = vst [vmem:[%s226 + $0x38] sm:$0xf] %v827
      %892 = vst [vmem:[%s226 + $0x3c] sm:$0xf] %v828
      %893 = vst [vmem:[%s226 + $0x40] sm:$0xf] %v829
      %894 = vst [vmem:[%s226 + $0x44] sm:$0xf] %v830
      %895 = vst [vmem:[%s226 + $0x48] sm:$0xf] %v831
      %896 = vst [vmem:[%s226 + $0x4c] sm:$0xf] %v832
      %897 = vst [vmem:[%s226 + $0x50] sm:$0xf] %v833
      %898 = vst [vmem:[%s226 + $0x54] sm:$0xf] %v834
      %899 = vst [vmem:[%s226 + $0x58] sm:$0xf] %v835
      %900 = vst [vmem:[%s226 + $0x5c] sm:$0xf] %v836
      %901 = vst [vmem:[%s226 + $0x60] sm:$0xf] %v837
      %902 = vst [vmem:[%s226 + $0x64] sm:$0xf] %v838
      %903 = vst [vmem:[%s226 + $0x68] sm:$0xf] %v839
      %904 = vst [vmem:[%s226 + $0x6c] sm:$0xf] %v840
      %905 = vst [vmem:[%s226 + $0x70] sm:$0xf] %v841
      %906 = vst [vmem:[%s226 + $0x74] sm:$0xf] %v842
      %907 = vst [vmem:[%s226 + $0x78] sm:$0xf] %v843
      %908 = vst [vmem:[%s226 + $0x7c] sm:$0xf] %v844
      %s909 = smul.u32 32, %s18
      %p910 = scmp.lt.s32.totalorder %s909, 63
      %s911 = scalar_select %p910, %s909, 63
      %p912 = scmp.lt.s32.totalorder %s19, 0
      %s913 = scalar_select %p912, %s19, 0
      %s914 = sadd.s32 %s913, %s911
      %s915 = smul.addr %s914, 4
      %s916 = scalar_lea.vmem %s3, %s915
      // Predicated region
      $region33: #{_lambda_.10} parent=31 // pred_check
        %p917 = pneg %p124
      $region34: #{_lambda_.10} parent=31 // pred_check_branch
        %919 = sbr.rel (%p917) target = $region36
      $region35: #{_lambda_.10} parent=31 // pred_region
        %s920 = smul.u32 32, %s18
      $region36: #{_lambda_.10} parent=31 // pred_fallthru
        _
    $region32: #{_lambda_.10} parent=5 // pred_fallthru
      _
    %p921 = scmp.le.s32.totalorder 2, %s9
    // Predicated region
    $region37: #{_lambda_.10} parent=5 // pred_check
      %p922 = pneg %p921
    $region38: #{_lambda_.10} parent=5 // pred_check_branch
      %924 = sbr.rel (%p922) target = $region40
    $region39: #{_lambda_.10} parent=5 // pred_region
      %s925 = ssub.s32 %s9, 2
      // Predicated region
      $region41: #{_lambda_.10} parent=39 // pred_check
        %p926 = pneg %p130
      $region42: #{_lambda_.10} parent=39 // pred_check_branch
        %928 = sbr.rel (%p926) target = $region44
      $region43: #{_lambda_.10} parent=39 // pred_region
        %s929 = smul.u32 32, %s20
        %p930 = scmp.lt.s32.totalorder %s929, 63
        %s931 = scalar_select %p930, %s929, 63
        %p932 = scmp.lt.s32.totalorder %s21, 0
        %s933 = scalar_select %p932, %s21, 0
        %s934 = sadd.s32 %s933, %s931
        %s935 = smul.addr %s934, 4
        %s936 = scalar_lea.vmem %s3, %s935
      $region44: #{_lambda_.10} parent=39 // pred_fallthru
        _
    $region40: #{_lambda_.10} parent=5 // pred_fallthru
      _
  $region6: #{_lambda_.10} parent=0 // loop_footer
    %s13 = sadd.s32 1, %s9
  $region7: #{_lambda_.10} parent=0 // loop_footer_branch
    %8 = sbr.rel target = $region3
  $region8: #{_lambda_.10} parent=0 // loop_exit
    _

// kernel: _lambda_.12
$region0: #{_lambda_.12}
  #allocation0 [shape = 'u32[]', space=smem, size = 0x4, offset = 0x4, fixed_abs, tag = 'smem constant byte address 0x4 - core index']
  #allocation1 [shape = 'u32[144,128]{1,0:T(1,128)}', space=vmem, size = 0x12000, scoped, tag = 'internal scratch']
  %s0 = inlined_call_operand.vmem [shape: bf16[128,256], index: 0, kind: input, shape index: {}]
  %s1 = inlined_call_operand.vmem [shape: bf16[256,128], index: 1, kind: input, shape index: {}]
  %s2 = inlined_call_operand.vmem [shape: bf16[128,128], index: 2, kind: output, shape index: {}]
  %s3 = sld [smem:[#allocation0]]
  $region18: #{_lambda_.12} parent=0
    _
  %s5 = ssub.s32 1, %s3
  %s6 = scalar_select 0, %s5, %s3
  // Predicated region
  $region2: #{_lambda_.12} parent=0 // pred_check
    _
  $region3: #{_lambda_.12} parent=0 // pred_check_branch
    %8 = sbr.rel (0) target = $region5
  $region4: #{_lambda_.12} parent=0 // pred_region
    _
  $region5: #{_lambda_.12} parent=0 // pred_fallthru
    _
  // Predicated region
  $region6: #{_lambda_.12} parent=0 // pred_check
    _
  $region7: #{_lambda_.12} parent=0 // pred_check_branch
    %10 = sbr.rel (0) target = $region9
  $region8: #{_lambda_.12} parent=0 // pred_region
    _
  $region9: #{_lambda_.12} parent=0 // pred_fallthru
    _
  %v12 = vld [vmem:[%s0] sm:$0xff]
  %v13 = vld [vmem:[%s0 + $0x8] sm:$0xff]
  %v14 = vld [vmem:[%s0 + $0x10] sm:$0xff]
  %v15 = vld [vmem:[%s0 + $0x18] sm:$0xff]
  %v16 = vld [vmem:[%s0 + $0x20] sm:$0xff]
  %v17 = vld [vmem:[%s0 + $0x28] sm:$0xff]
  %v18 = vld [vmem:[%s0 + $0x30] sm:$0xff]
  %v19 = vld [vmem:[%s0 + $0x38] sm:$0xff]
  %v20 = vld [vmem:[%s0 + $0x40] sm:$0xff]
  %v21 = vld [vmem:[%s0 + $0x48] sm:$0xff]
  %v22 = vld [vmem:[%s0 + $0x50] sm:$0xff]
  %v23 = vld [vmem:[%s0 + $0x58] sm:$0xff]
  %v24 = vld [vmem:[%s0 + $0x60] sm:$0xff]
  %v25 = vld [vmem:[%s0 + $0x68] sm:$0xff]
  %v26 = vld [vmem:[%s0 + $0x70] sm:$0xff]
  %v27 = vld [vmem:[%s0 + $0x78] sm:$0xff]
  %v28 = vld [vmem:[%s1] sm:$0xf]
  %v29 = vld [vmem:[%s1 + $0x4] sm:$0xf]
  %v30 = vld [vmem:[%s1 + $0x8] sm:$0xf]
  %v31 = vld [vmem:[%s1 + $0xc] sm:$0xf]
  %v32 = vld [vmem:[%s1 + $0x10] sm:$0xf]
  %v33 = vld [vmem:[%s1 + $0x14] sm:$0xf]
  %v34 = vld [vmem:[%s1 + $0x18] sm:$0xf]
  %v35 = vld [vmem:[%s1 + $0x1c] sm:$0xf]
  %v36 = vld [vmem:[%s1 + $0x20] sm:$0xf]
  %v37 = vld [vmem:[%s1 + $0x24] sm:$0xf]
  %v38 = vld [vmem:[%s1 + $0x28] sm:$0xf]
  %v39 = vld [vmem:[%s1 + $0x2c] sm:$0xf]
  %v40 = vld [vmem:[%s1 + $0x30] sm:$0xf]
  %v41 = vld [vmem:[%s1 + $0x34] sm:$0xf]
  %v42 = vld [vmem:[%s1 + $0x38] sm:$0xf]
  %v43 = vld [vmem:[%s1 + $0x3c] sm:$0xf]
  %v44 = vld [vmem:[%s1 + $0x40] sm:$0xf]
  %v45 = vld [vmem:[%s1 + $0x44] sm:$0xf]
  %v46 = vld [vmem:[%s1 + $0x48] sm:$0xf]
  %v47 = vld [vmem:[%s1 + $0x4c] sm:$0xf]
  %v48 = vld [vmem:[%s1 + $0x50] sm:$0xf]
  %v49 = vld [vmem:[%s1 + $0x54] sm:$0xf]
  %v50 = vld [vmem:[%s1 + $0x58] sm:$0xf]
  %v51 = vld [vmem:[%s1 + $0x5c] sm:$0xf]
  %v52 = vld [vmem:[%s1 + $0x60] sm:$0xf]
  %v53 = vld [vmem:[%s1 + $0x64] sm:$0xf]
  %v54 = vld [vmem:[%s1 + $0x68] sm:$0xf]
  %v55 = vld [vmem:[%s1 + $0x6c] sm:$0xf]
  %v56 = vld [vmem:[%s1 + $0x70] sm:$0xf]
  %v57 = vld [vmem:[%s1 + $0x74] sm:$0xf]
  %v58 = vld [vmem:[%s1 + $0x78] sm:$0xf]
  %v59 = vld [vmem:[%s1 + $0x7c] sm:$0xf]
  %v76 = vunpack.c.l.b16 %v12
  %v77 = vunpack.c.h.b16 %v12
  %v78 = vunpack.c.l.b16 %v13
  %v79 = vunpack.c.h.b16 %v13
  %v80 = vunpack.c.l.b16 %v14
  %v81 = vunpack.c.h.b16 %v14
  %v82 = vunpack.c.l.b16 %v15
  %v83 = vunpack.c.h.b16 %v15
  %v84 = vunpack.c.l.b16 %v16
  %v85 = vunpack.c.h.b16 %v16
  %v86 = vunpack.c.l.b16 %v17
  %v87 = vunpack.c.h.b16 %v17
  %v88 = vunpack.c.l.b16 %v18
  %v89 = vunpack.c.h.b16 %v18
  %v90 = vunpack.c.l.b16 %v19
  %v91 = vunpack.c.h.b16 %v19
  %v92 = vunpack.c.l.b16 %v20
  %v93 = vunpack.c.h.b16 %v20
  %v94 = vunpack.c.l.b16 %v21
  %v95 = vunpack.c.h.b16 %v21
  %v96 = vunpack.c.l.b16 %v22
  %v97 = vunpack.c.h.b16 %v22
  %v98 = vunpack.c.l.b16 %v23
  %v99 = vunpack.c.h.b16 %v23
  %v100 = vunpack.c.l.b16 %v24
  %v101 = vunpack.c.h.b16 %v24
  %v102 = vunpack.c.l.b16 %v25
  %v103 = vunpack.c.h.b16 %v25
  %v104 = vunpack.c.l.b16 %v26
  %v105 = vunpack.c.h.b16 %v26
  %v106 = vunpack.c.l.b16 %v27
  %v107 = vunpack.c.h.b16 %v27
  %v108 = vpack.c.b16 %v78, %v76
  %v109 = vpack.c.b16 %v79, %v77
  %v110 = vpack.c.b16 %v82, %v80
  %v111 = vpack.c.b16 %v83, %v81
  %v112 = vpack.c.b16 %v86, %v84
  %v113 = vpack.c.b16 %v87, %v85
  %v114 = vpack.c.b16 %v90, %v88
  %v115 = vpack.c.b16 %v91, %v89
  %v116 = vpack.c.b16 %v94, %v92
  %v117 = vpack.c.b16 %v95, %v93
  %v118 = vpack.c.b16 %v98, %v96
  %v119 = vpack.c.b16 %v99, %v97
  %v120 = vpack.c.b16 %v102, %v100
  %v121 = vpack.c.b16 %v103, %v101
  %v122 = vpack.c.b16 %v106, %v104
  %v123 = vpack.c.b16 %v107, %v105
  %v172 = vunpack.c.l.b16 %v28
  %v173 = vunpack.c.l.b16 %v29
  %v174 = vunpack.c.l.b16 %v30
  %v175 = vunpack.c.l.b16 %v31
  %v176 = vunpack.c.l.b16 %v32
  %v177 = vunpack.c.l.b16 %v33
  %v178 = vunpack.c.l.b16 %v34
  %v179 = vunpack.c.l.b16 %v35
  %v180 = vunpack.c.l.b16 %v36
  %v181 = vunpack.c.l.b16 %v37
  %v182 = vunpack.c.l.b16 %v38
  %v183 = vunpack.c.l.b16 %v39
  %v184 = vunpack.c.l.b16 %v40
  %v185 = vunpack.c.l.b16 %v41
  %v186 = vunpack.c.l.b16 %v42
  %v187 = vunpack.c.l.b16 %v43
  %v188 = vunpack.c.l.b16 %v44
  %v189 = vunpack.c.l.b16 %v45
  %v190 = vunpack.c.l.b16 %v46
  %v191 = vunpack.c.l.b16 %v47
  %v192 = vunpack.c.l.b16 %v48
  %v193 = vunpack.c.l.b16 %v49
  %v194 = vunpack.c.l.b16 %v50
  %v195 = vunpack.c.l.b16 %v51
  %v196 = vunpack.c.l.b16 %v52
  %v197 = vunpack.c.l.b16 %v53
  %v198 = vunpack.c.l.b16 %v54
  %v199 = vunpack.c.l.b16 %v55
  %v200 = vunpack.c.l.b16 %v56
  %v201 = vunpack.c.l.b16 %v57
  %v202 = vunpack.c.l.b16 %v58
  %v203 = vunpack.c.l.b16 %v59
  %v204 = vpack.c.b16 %v173, %v172
  %v205 = vpack.c.b16 %v175, %v174
  %v206 = vpack.c.b16 %v177, %v176
  %v207 = vpack.c.b16 %v179, %v178
  %v208 = vpack.c.b16 %v181, %v180
  %v209 = vpack.c.b16 %v183, %v182
  %v210 = vpack.c.b16 %v185, %v184
  %v211 = vpack.c.b16 %v187, %v186
  %v212 = vpack.c.b16 %v189, %v188
  %v213 = vpack.c.b16 %v191, %v190
  %v214 = vpack.c.b16 %v193, %v192
  %v215 = vpack.c.b16 %v195, %v194
  %v216 = vpack.c.b16 %v197, %v196
  %v217 = vpack.c.b16 %v199, %v198
  %v218 = vpack.c.b16 %v201, %v200
  %v219 = vpack.c.b16 %v203, %v202
  %236 = vmatprep.subr.bf16.mxu0 0
  %237 = vmatpush1.bf16.msra.mxu0 %v204
  %238 = vmatprep.subr.bf16.mxu0 0
  %239 = vmatpush1.bf16.msra.mxu0 %v205
  %240 = vmatprep.subr.bf16.mxu0 0
  %241 = vmatpush1.bf16.msra.mxu0 %v206
  %242 = vmatprep.subr.bf16.mxu0 0
  %243 = vmatpush1.bf16.msra.mxu0 %v207
  %244 = vmatprep.subr.bf16.mxu0 0
  %245 = vmatpush1.bf16.msra.mxu0 %v208
  %246 = vmatprep.subr.bf16.mxu0 0
  %247 = vmatpush1.bf16.msra.mxu0 %v209
  %248 = vmatprep.subr.bf16.mxu0 0
  %249 = vmatpush1.bf16.msra.mxu0 %v210
  %250 = vmatprep.subr.bf16.mxu0 0
  %251 = vmatpush1.bf16.msra.mxu0 %v211
  %252 = vmatprep.subr.bf16.mxu0 0
  %253 = vmatpush1.bf16.msra.mxu0 %v212
  %254 = vmatprep.subr.bf16.mxu0 0
  %255 = vmatpush1.bf16.msra.mxu0 %v213
  %256 = vmatprep.subr.bf16.mxu0 0
  %257 = vmatpush1.bf16.msra.mxu0 %v214
  %258 = vmatprep.subr.bf16.mxu0 0
  %259 = vmatpush1.bf16.msra.mxu0 %v215
  %260 = vmatprep.subr.bf16.mxu0 0
  %261 = vmatpush1.bf16.msra.mxu0 %v216
  %262 = vmatprep.subr.bf16.mxu0 0
  %263 = vmatpush1.bf16.msra.mxu0 %v217
  %264 = vmatprep.subr.bf16.mxu0 0
  %265 = vmatpush1.bf16.msra.mxu0 %v218
  %266 = vmatprep.subr.bf16.mxu0 0
  %267 = vmatpush1.bf16.msra.mxu0 %v219
  %268 = vmatprep.mubr.bf16.mxu0 %v109
  %269 = vmatmul.mubr.bf16.gmra.mrb[0].mxu0 %v108
  %v270 = vpop.f32.mrb[0].mxu0
  %v271 = vadd.f32 0.0, %v270
  %v272 = vpop.f32.mrb[0].mxu0
  %v273 = vpop.f32.mrb[0].mxu0
  %v274 = vadd.f32 0.0, %v273
  %v275 = vpop.f32.mrb[0].mxu0
  %276 = vmatprep.mubr.bf16.mxu0 %v111
  %277 = vmatmul.mubr.bf16.gmra.mrb[0].mxu0 %v110
  %v278 = vpop.f32.mrb[0].mxu0
  %v279 = vadd.f32 0.0, %v278
  %v280 = vpop.f32.mrb[0].mxu0
  %v281 = vpop.f32.mrb[0].mxu0
  %v282 = vadd.f32 0.0, %v281
  %v283 = vpop.f32.mrb[0].mxu0
  %284 = vmatprep.mubr.bf16.mxu0 %v113
  %285 = vmatmul.mubr.bf16.gmra.mrb[0].mxu0 %v112
  %v286 = vpop.f32.mrb[0].mxu0
  %v287 = vadd.f32 0.0, %v286
  %v288 = vpop.f32.mrb[0].mxu0
  %v289 = vpop.f32.mrb[0].mxu0
  %v290 = vadd.f32 0.0, %v289
  %v291 = vpop.f32.mrb[0].mxu0
  %292 = vmatprep.mubr.bf16.mxu0 %v115
  %293 = vmatmul.mubr.bf16.gmra.mrb[0].mxu0 %v114
  %v294 = vpop.f32.mrb[0].mxu0
  %v295 = vadd.f32 0.0, %v294
  %v296 = vpop.f32.mrb[0].mxu0
  %v297 = vpop.f32.mrb[0].mxu0
  %v298 = vadd.f32 0.0, %v297
  %v299 = vpop.f32.mrb[0].mxu0
  %300 = vmatprep.mubr.bf16.mxu0 %v117
  %301 = vmatmul.mubr.bf16.gmra.mrb[0].mxu0 %v116
  %v302 = vpop.f32.mrb[0].mxu0
  %v303 = vadd.f32 0.0, %v302
  %v304 = vpop.f32.mrb[0].mxu0
  %v305 = vpop.f32.mrb[0].mxu0
  %v306 = vadd.f32 0.0, %v305
  %v307 = vpop.f32.mrb[0].mxu0
  %308 = vmatprep.mubr.bf16.mxu0 %v119
  %309 = vmatmul.mubr.bf16.gmra.mrb[0].mxu0 %v118
  %v310 = vpop.f32.mrb[0].mxu0
  %v311 = vadd.f32 0.0, %v310
  %v312 = vpop.f32.mrb[0].mxu0
  %v313 = vpop.f32.mrb[0].mxu0
  %v314 = vadd.f32 0.0, %v313
  %v315 = vpop.f32.mrb[0].mxu0
  %316 = vmatprep.mubr.bf16.mxu0 %v121
  %317 = vmatmul.mubr.bf16.gmra.mrb[0].mxu0 %v120
  %v318 = vpop.f32.mrb[0].mxu0
  %v319 = vadd.f32 0.0, %v318
  %v320 = vpop.f32.mrb[0].mxu0
  %v321 = vpop.f32.mrb[0].mxu0
  %v322 = vadd.f32 0.0, %v321
  %v323 = vpop.f32.mrb[0].mxu0
  %324 = vmatprep.mubr.bf16.mxu0 %v123
  %325 = vmatmul.mubr.bf16.gmra.mrb[0].mxu0 %v122
  %v326 = vpop.f32.mrb[0].mxu0
  %v327 = vadd.f32 0.0, %v326
  %v328 = vpop.f32.mrb[0].mxu0
  %v329 = vpop.f32.mrb[0].mxu0
  %v330 = vadd.f32 0.0, %v329
  %v331 = vpop.f32.mrb[0].mxu0
  %332 = vdwg.mxu0
  %v333 = vpack.c.bf16 %v274, %v271
  %v334 = vpack.c.bf16 %v282, %v279
  %v335 = vpack.c.bf16 %v290, %v287
  %v336 = vpack.c.bf16 %v298, %v295
  %v337 = vpack.c.bf16 %v306, %v303
  %v338 = vpack.c.bf16 %v314, %v311
  %v339 = vpack.c.bf16 %v322, %v319
  %v340 = vpack.c.bf16 %v330, %v327
  %v349 = vunpack.c.l.b16 %v333
  %v350 = vunpack.c.h.b16 %v333
  %v351 = vunpack.c.l.b16 %v334
  %v352 = vunpack.c.h.b16 %v334
  %v353 = vunpack.c.l.b16 %v335
  %v354 = vunpack.c.h.b16 %v335
  %v355 = vunpack.c.l.b16 %v336
  %v356 = vunpack.c.h.b16 %v336
  %v357 = vunpack.c.l.b16 %v337
  %v358 = vunpack.c.h.b16 %v337
  %v359 = vunpack.c.l.b16 %v338
  %v360 = vunpack.c.h.b16 %v338
  %v361 = vunpack.c.l.b16 %v339
  %v362 = vunpack.c.h.b16 %v339
  %v363 = vunpack.c.l.b16 %v340
  %v364 = vunpack.c.h.b16 %v340
  %v365 = vpack.c.b16 %v349, %v349
  %v366 = vpack.c.b16 %v350, %v350
  %v367 = vpack.c.b16 %v351, %v351
  %v368 = vpack.c.b16 %v352, %v352
  %v369 = vpack.c.b16 %v353, %v353
  %v370 = vpack.c.b16 %v354, %v354
  %v371 = vpack.c.b16 %v355, %v355
  %v372 = vpack.c.b16 %v356, %v356
  %v373 = vpack.c.b16 %v357, %v357
  %v374 = vpack.c.b16 %v358, %v358
  %v375 = vpack.c.b16 %v359, %v359
  %v376 = vpack.c.b16 %v360, %v360
  %v377 = vpack.c.b16 %v361, %v361
  %v378 = vpack.c.b16 %v362, %v362
  %v379 = vpack.c.b16 %v363, %v363
  %v380 = vpack.c.b16 %v364, %v364
  %397 = vst [vmem:[%s2] sm:$0xf] %v365
  %398 = vst [vmem:[%s2 + $0x4] sm:$0xf] %v366
  %399 = vst [vmem:[%s2 + $0x8] sm:$0xf] %v367
  %400 = vst [vmem:[%s2 + $0xc] sm:$0xf] %v368
  %401 = vst [vmem:[%s2 + $0x10] sm:$0xf] %v369
  %402 = vst [vmem:[%s2 + $0x14] sm:$0xf] %v370
  %403 = vst [vmem:[%s2 + $0x18] sm:$0xf] %v371
  %404 = vst [vmem:[%s2 + $0x1c] sm:$0xf] %v372
  %405 = vst [vmem:[%s2 + $0x20] sm:$0xf] %v373
  %406 = vst [vmem:[%s2 + $0x24] sm:$0xf] %v374
  %407 = vst [vmem:[%s2 + $0x28] sm:$0xf] %v375
  %408 = vst [vmem:[%s2 + $0x2c] sm:$0xf] %v376
  %409 = vst [vmem:[%s2 + $0x30] sm:$0xf] %v377
  %410 = vst [vmem:[%s2 + $0x34] sm:$0xf] %v378
  %411 = vst [vmem:[%s2 + $0x38] sm:$0xf] %v379
  %412 = vst [vmem:[%s2 + $0x3c] sm:$0xf] %v380
  // Predicated region
  $region10: #{_lambda_.12} parent=0 // pred_check
    _
  $region11: #{_lambda_.12} parent=0 // pred_check_branch
    %414 = sbr.rel (0) target = $region13
  $region12: #{_lambda_.12} parent=0 // pred_region
    _
  $region13: #{_lambda_.12} parent=0 // pred_fallthru
    _
  // Predicated region
  $region14: #{_lambda_.12} parent=0 // pred_check
    _
  $region15: #{_lambda_.12} parent=0 // pred_check_branch
    %416 = sbr.rel (0) target = $region17
  $region16: #{_lambda_.12} parent=0 // pred_region
    _
  $region17: #{_lambda_.12} parent=0 // pred_fallthru
    _

// kernel: _lambda_.15
$region0: #{_lambda_.15}
  #allocation0 [shape = 'u32[]', space=smem, size = 0x4, offset = 0x4, fixed_abs, tag = 'smem constant byte address 0x4 - core index']
  #allocation1 [shape = 'u32[144,128]{1,0:T(1,128)}', space=vmem, size = 0x12000, scoped, tag = 'internal scratch']
  %s0 = inlined_call_operand.vmem [shape: bf16[128,128], index: 0, kind: input, shape index: {}]
  %s1 = inlined_call_operand.vmem [shape: f32[1,128], index: 1, kind: input, shape index: {}]
  %s2 = inlined_call_operand.vmem [shape: f32[1,128], index: 2, kind: input, shape index: {}]
  %s3 = inlined_call_operand.vmem [shape: bf16[128,128], index: 3, kind: input, shape index: {}]
  %s4 = inlined_call_operand.vmem [shape: bf16[128,128], index: 4, kind: output, shape index: {}]
  %s5 = sld [smem:[#allocation0]]
  $region26: #{_lambda_.15} parent=0
    _
  %s7 = ssub.s32 1, %s5
  %s8 = scalar_select 0, %s7, %s5
  // Predicated region
  $region2: #{_lambda_.15} parent=0 // pred_check
    _
  $region3: #{_lambda_.15} parent=0 // pred_check_branch
    %10 = sbr.rel (0) target = $region5
  $region4: #{_lambda_.15} parent=0 // pred_region
    _
  $region5: #{_lambda_.15} parent=0 // pred_fallthru
    _
  // Predicated region
  $region6: #{_lambda_.15} parent=0 // pred_check
    _
  $region7: #{_lambda_.15} parent=0 // pred_check_branch
    %12 = sbr.rel (0) target = $region9
  $region8: #{_lambda_.15} parent=0 // pred_region
    _
  $region9: #{_lambda_.15} parent=0 // pred_fallthru
    _
  // Predicated region
  $region10: #{_lambda_.15} parent=0 // pred_check
    _
  $region11: #{_lambda_.15} parent=0 // pred_check_branch
    %14 = sbr.rel (0) target = $region13
  $region12: #{_lambda_.15} parent=0 // pred_region
    _
  $region13: #{_lambda_.15} parent=0 // pred_fallthru
    _
  // Predicated region
  $region14: #{_lambda_.15} parent=0 // pred_check
    _
  $region15: #{_lambda_.15} parent=0 // pred_check_branch
    %16 = sbr.rel (0) target = $region17
  $region16: #{_lambda_.15} parent=0 // pred_region
    _
  $region17: #{_lambda_.15} parent=0 // pred_fallthru
    _
  %v18 = vld [vmem:[%s0] sm:$0xf]
  %v19 = vld [vmem:[%s0 + $0x4] sm:$0xf]
  %v20 = vld [vmem:[%s0 + $0x8] sm:$0xf]
  %v21 = vld [vmem:[%s0 + $0xc] sm:$0xf]
  %v22 = vld [vmem:[%s0 + $0x10] sm:$0xf]
  %v23 = vld [vmem:[%s0 + $0x14] sm:$0xf]
  %v24 = vld [vmem:[%s0 + $0x18] sm:$0xf]
  %v25 = vld [vmem:[%s0 + $0x1c] sm:$0xf]
  %v26 = vld [vmem:[%s0 + $0x20] sm:$0xf]
  %v27 = vld [vmem:[%s0 + $0x24] sm:$0xf]
  %v28 = vld [vmem:[%s0 + $0x28] sm:$0xf]
  %v29 = vld [vmem:[%s0 + $0x2c] sm:$0xf]
  %v30 = vld [vmem:[%s0 + $0x30] sm:$0xf]
  %v31 = vld [vmem:[%s0 + $0x34] sm:$0xf]
  %v32 = vld [vmem:[%s0 + $0x38] sm:$0xf]
  %v33 = vld [vmem:[%s0 + $0x3c] sm:$0xf]
  %v34 = vunpack.c.l.bf16 %v18
  %v35 = vunpack.c.l.bf16 %v19
  %v36 = vunpack.c.l.bf16 %v20
  %v37 = vunpack.c.l.bf16 %v21
  %v38 = vunpack.c.l.bf16 %v22
  %v39 = vunpack.c.l.bf16 %v23
  %v40 = vunpack.c.l.bf16 %v24
  %v41 = vunpack.c.l.bf16 %v25
  %v42 = vunpack.c.l.bf16 %v26
  %v43 = vunpack.c.l.bf16 %v27
  %v44 = vunpack.c.l.bf16 %v28
  %v45 = vunpack.c.l.bf16 %v29
  %v46 = vunpack.c.l.bf16 %v30
  %v47 = vunpack.c.l.bf16 %v31
  %v48 = vunpack.c.l.bf16 %v32
  %v49 = vunpack.c.l.bf16 %v33
  %v50 = vld [vmem:[%s1] sm:$0x1]
  %v52 = vlaneseq
  %v53 = vshrl.u32 %v52, 7
  %v54 = vsub.s32 0, %v53
  %v55 = vrot.slane %v50, %v54
  %v57 = vmul.f32 %v34, %v55
  %v58 = vmul.f32 %v35, %v55
  %v59 = vmul.f32 %v36, %v55
  %v60 = vmul.f32 %v37, %v55
  %v61 = vmul.f32 %v38, %v55
  %v62 = vmul.f32 %v39, %v55
  %v63 = vmul.f32 %v40, %v55
  %v64 = vmul.f32 %v41, %v55
  %v65 = vmul.f32 %v42, %v55
  %v66 = vmul.f32 %v43, %v55
  %v67 = vmul.f32 %v44, %v55
  %v68 = vmul.f32 %v45, %v55
  %v69 = vmul.f32 %v46, %v55
  %v70 = vmul.f32 %v47, %v55
  %v71 = vmul.f32 %v48, %v55
  %v72 = vmul.f32 %v49, %v55
  %v73 = vld [vmem:[%s2] sm:$0x1]
  %v75 = vlaneseq
  %v76 = vshrl.u32 %v75, 7
  %v77 = vsub.s32 0, %v76
  %v78 = vrot.slane %v73, %v77
  %v80 = vadd.f32 %v57, %v78
  %v81 = vadd.f32 %v58, %v78
  %v82 = vadd.f32 %v59, %v78
  %v83 = vadd.f32 %v60, %v78
  %v84 = vadd.f32 %v61, %v78
  %v85 = vadd.f32 %v62, %v78
  %v86 = vadd.f32 %v63, %v78
  %v87 = vadd.f32 %v64, %v78
  %v88 = vadd.f32 %v65, %v78
  %v89 = vadd.f32 %v66, %v78
  %v90 = vadd.f32 %v67, %v78
  %v91 = vadd.f32 %v68, %v78
  %v92 = vadd.f32 %v69, %v78
  %v93 = vadd.f32 %v70, %v78
  %v94 = vadd.f32 %v71, %v78
  %v95 = vadd.f32 %v72, %v78
  %v96 = vmax.f32 %v80, 0.0
  %v97 = vmax.f32 %v81, 0.0
  %v98 = vmax.f32 %v82, 0.0
  %v99 = vmax.f32 %v83, 0.0
  %v100 = vmax.f32 %v84, 0.0
  %v101 = vmax.f32 %v85, 0.0
  %v102 = vmax.f32 %v86, 0.0
  %v103 = vmax.f32 %v87, 0.0
  %v104 = vmax.f32 %v88, 0.0
  %v105 = vmax.f32 %v89, 0.0
  %v106 = vmax.f32 %v90, 0.0
  %v107 = vmax.f32 %v91, 0.0
  %v108 = vmax.f32 %v92, 0.0
  %v109 = vmax.f32 %v93, 0.0
  %v110 = vmax.f32 %v94, 0.0
  %v111 = vmax.f32 %v95, 0.0
  %v112 = vpack.c.bf16 %v97, %v96
  %v113 = vpack.c.bf16 %v99, %v98
  %v114 = vpack.c.bf16 %v101, %v100
  %v115 = vpack.c.bf16 %v103, %v102
  %v116 = vpack.c.bf16 %v105, %v104
  %v117 = vpack.c.bf16 %v107, %v106
  %v118 = vpack.c.bf16 %v109, %v108
  %v119 = vpack.c.bf16 %v111, %v110
  %v120 = vld [vmem:[%s3] sm:$0xf]
  %v121 = vld [vmem:[%s3 + $0x4] sm:$0xf]
  %v122 = vld [vmem:[%s3 + $0x8] sm:$0xf]
  %v123 = vld [vmem:[%s3 + $0xc] sm:$0xf]
  %v124 = vld [vmem:[%s3 + $0x10] sm:$0xf]
  %v125 = vld [vmem:[%s3 + $0x14] sm:$0xf]
  %v126 = vld [vmem:[%s3 + $0x18] sm:$0xf]
  %v127 = vld [vmem:[%s3 + $0x1c] sm:$0xf]
  %v128 = vld [vmem:[%s3 + $0x20] sm:$0xf]
  %v129 = vld [vmem:[%s3 + $0x24] sm:$0xf]
  %v130 = vld [vmem:[%s3 + $0x28] sm:$0xf]
  %v131 = vld [vmem:[%s3 + $0x2c] sm:$0xf]
  %v132 = vld [vmem:[%s3 + $0x30] sm:$0xf]
  %v133 = vld [vmem:[%s3 + $0x34] sm:$0xf]
  %v134 = vld [vmem:[%s3 + $0x38] sm:$0xf]
  %v135 = vld [vmem:[%s3 + $0x3c] sm:$0xf]
  %v152 = vunpack.c.l.b16 %v120
  %v153 = vunpack.c.l.b16 %v121
  %v154 = vunpack.c.l.b16 %v122
  %v155 = vunpack.c.l.b16 %v123
  %v156 = vunpack.c.l.b16 %v124
  %v157 = vunpack.c.l.b16 %v125
  %v158 = vunpack.c.l.b16 %v126
  %v159 = vunpack.c.l.b16 %v127
  %v160 = vunpack.c.l.b16 %v128
  %v161 = vunpack.c.l.b16 %v129
  %v162 = vunpack.c.l.b16 %v130
  %v163 = vunpack.c.l.b16 %v131
  %v164 = vunpack.c.l.b16 %v132
  %v165 = vunpack.c.l.b16 %v133
  %v166 = vunpack.c.l.b16 %v134
  %v167 = vunpack.c.l.b16 %v135
  %v168 = vpack.c.b16 %v153, %v152
  %v169 = vpack.c.b16 %v155, %v154
  %v170 = vpack.c.b16 %v157, %v156
  %v171 = vpack.c.b16 %v159, %v158
  %v172 = vpack.c.b16 %v161, %v160
  %v173 = vpack.c.b16 %v163, %v162
  %v174 = vpack.c.b16 %v165, %v164
  %v175 = vpack.c.b16 %v167, %v166
  %184 = vmatprep.subr.bf16.mxu0 0
  %185 = vmatpush1.bf16.msra.mxu0 %v168
  %186 = vmatprep.subr.bf16.mxu0 0
  %187 = vmatpush1.bf16.msra.mxu0 %v169
  %188 = vmatprep.subr.bf16.mxu0 0
  %189 = vmatpush1.bf16.msra.mxu0 %v170
  %190 = vmatprep.subr.bf16.mxu0 0
  %191 = vmatpush1.bf16.msra.mxu0 %v171
  %192 = vmatprep.subr.bf16.mxu0 0
  %193 = vmatpush1.bf16.msra.mxu0 %v172
  %194 = vmatprep.subr.bf16.mxu0 0
  %195 = vmatpush1.bf16.msra.mxu0 %v173
  %196 = vmatprep.subr.bf16.mxu0 0
  %197 = vmatpush1.bf16.msra.mxu0 %v174
  %198 = vmatprep.subr.bf16.mxu0 0
  %199 = vmatpush1.bf16.msra.mxu0 %v175
  %200 = vmatprep.subr.bf16.mxu0 0
  %201 = vmatpush1.bf16.msra.mxu0 0
  %202 = vmatprep.subr.bf16.mxu0 0
  %203 = vmatpush1.bf16.msra.mxu0 0
  %204 = vmatprep.subr.bf16.mxu0 0
  %205 = vmatpush1.bf16.msra.mxu0 0
  %206 = vmatprep.subr.bf16.mxu0 0
  %207 = vmatpush1.bf16.msra.mxu0 0
  %208 = vmatprep.subr.bf16.mxu0 0
  %209 = vmatpush1.bf16.msra.mxu0 0
  %210 = vmatprep.subr.bf16.mxu0 0
  %211 = vmatpush1.bf16.msra.mxu0 0
  %212 = vmatprep.subr.bf16.mxu0 0
  %213 = vmatpush1.bf16.msra.mxu0 0
  %214 = vmatprep.subr.bf16.mxu0 0
  %215 = vmatpush1.bf16.msra.mxu0 0
  %216 = vmatprep.mubr.bf16.mxu0 0
  %217 = vmatmul.mubr.bf16.gmra.mrb[0].mxu0 %v112
  %v218 = vpop.f32.mrb[0].mxu0
  %v219 = vadd.f32 0.0, %v218
  %v220 = vpop.f32.mrb[0].mxu0
  %v221 = vpop.f32.mrb[0].mxu0
  %v222 = vadd.f32 0.0, %v221
  %v223 = vpop.f32.mrb[0].mxu0
  %224 = vmatprep.mubr.bf16.mxu0 0
  %225 = vmatmul.mubr.bf16.gmra.mrb[0].mxu0 %v113
  %v226 = vpop.f32.mrb[0].mxu0
  %v227 = vadd.f32 0.0, %v226
  %v228 = vpop.f32.mrb[0].mxu0
  %v229 = vpop.f32.mrb[0].mxu0
  %v230 = vadd.f32 0.0, %v229
  %v231 = vpop.f32.mrb[0].mxu0
  %232 = vmatprep.mubr.bf16.mxu0 0
  %233 = vmatmul.mubr.bf16.gmra.mrb[0].mxu0 %v114
  %v234 = vpop.f32.mrb[0].mxu0
  %v235 = vadd.f32 0.0, %v234
  %v236 = vpop.f32.mrb[0].mxu0
  %v237 = vpop.f32.mrb[0].mxu0
  %v238 = vadd.f32 0.0, %v237
  %v239 = vpop.f32.mrb[0].mxu0
  %240 = vmatprep.mubr.bf16.mxu0 0
  %241 = vmatmul.mubr.bf16.gmra.mrb[0].mxu0 %v115
  %v242 = vpop.f32.mrb[0].mxu0
  %v243 = vadd.f32 0.0, %v242
  %v244 = vpop.f32.mrb[0].mxu0
  %v245 = vpop.f32.mrb[0].mxu0
  %v246 = vadd.f32 0.0, %v245
  %v247 = vpop.f32.mrb[0].mxu0
  %248 = vmatprep.mubr.bf16.mxu0 0
  %249 = vmatmul.mubr.bf16.gmra.mrb[0].mxu0 %v116
  %v250 = vpop.f32.mrb[0].mxu0
  %v251 = vadd.f32 0.0, %v250
  %v252 = vpop.f32.mrb[0].mxu0
  %v253 = vpop.f32.mrb[0].mxu0
  %v254 = vadd.f32 0.0, %v253
  %v255 = vpop.f32.mrb[0].mxu0
  %256 = vmatprep.mubr.bf16.mxu0 0
  %257 = vmatmul.mubr.bf16.gmra.mrb[0].mxu0 %v117
  %v258 = vpop.f32.mrb[0].mxu0
  %v259 = vadd.f32 0.0, %v258
  %v260 = vpop.f32.mrb[0].mxu0
  %v261 = vpop.f32.mrb[0].mxu0
  %v262 = vadd.f32 0.0, %v261
  %v263 = vpop.f32.mrb[0].mxu0
  %264 = vmatprep.mubr.bf16.mxu0 0
  %265 = vmatmul.mubr.bf16.gmra.mrb[0].mxu0 %v118
  %v266 = vpop.f32.mrb[0].mxu0
  %v267 = vadd.f32 0.0, %v266
  %v268 = vpop.f32.mrb[0].mxu0
  %v269 = vpop.f32.mrb[0].mxu0
  %v270 = vadd.f32 0.0, %v269
  %v271 = vpop.f32.mrb[0].mxu0
  %272 = vmatprep.mubr.bf16.mxu0 0
  %273 = vmatmul.mubr.bf16.gmra.mrb[0].mxu0 %v119
  %v274 = vpop.f32.mrb[0].mxu0
  %v275 = vadd.f32 0.0, %v274
  %v276 = vpop.f32.mrb[0].mxu0
  %v277 = vpop.f32.mrb[0].mxu0
  %v278 = vadd.f32 0.0, %v277
  %v279 = vpop.f32.mrb[0].mxu0
  %280 = vdwg.mxu0
  %v281 = vpack.c.bf16 %v222, %v219
  %v282 = vpack.c.bf16 %v230, %v227
  %v283 = vpack.c.bf16 %v238, %v235
  %v284 = vpack.c.bf16 %v246, %v243
  %v285 = vpack.c.bf16 %v254, %v251
  %v286 = vpack.c.bf16 %v262, %v259
  %v287 = vpack.c.bf16 %v270, %v267
  %v288 = vpack.c.bf16 %v278, %v275
  %v297 = vunpack.c.l.b16 %v281
  %v298 = vunpack.c.h.b16 %v281
  %v299 = vunpack.c.l.b16 %v282
  %v300 = vunpack.c.h.b16 %v282
  %v301 = vunpack.c.l.b16 %v283
  %v302 = vunpack.c.h.b16 %v283
  %v303 = vunpack.c.l.b16 %v284
  %v304 = vunpack.c.h.b16 %v284
  %v305 = vunpack.c.l.b16 %v285
  %v306 = vunpack.c.h.b16 %v285
  %v307 = vunpack.c.l.b16 %v286
  %v308 = vunpack.c.h.b16 %v286
  %v309 = vunpack.c.l.b16 %v287
  %v310 = vunpack.c.h.b16 %v287
  %v311 = vunpack.c.l.b16 %v288
  %v312 = vunpack.c.h.b16 %v288
  %v313 = vpack.c.b16 %v297, %v297
  %v314 = vpack.c.b16 %v298, %v298
  %v315 = vpack.c.b16 %v299, %v299
  %v316 = vpack.c.b16 %v300, %v300
  %v317 = vpack.c.b16 %v301, %v301
  %v318 = vpack.c.b16 %v302, %v302
  %v319 = vpack.c.b16 %v303, %v303
  %v320 = vpack.c.b16 %v304, %v304
  %v321 = vpack.c.b16 %v305, %v305
  %v322 = vpack.c.b16 %v306, %v306
  %v323 = vpack.c.b16 %v307, %v307
  %v324 = vpack.c.b16 %v308, %v308
  %v325 = vpack.c.b16 %v309, %v309
  %v326 = vpack.c.b16 %v310, %v310
  %v327 = vpack.c.b16 %v311, %v311
  %v328 = vpack.c.b16 %v312, %v312
  %345 = vst [vmem:[%s4] sm:$0xf] %v313
  %346 = vst [vmem:[%s4 + $0x4] sm:$0xf] %v314
  %347 = vst [vmem:[%s4 + $0x8] sm:$0xf] %v315
  %348 = vst [vmem:[%s4 + $0xc] sm:$0xf] %v316
  %349 = vst [vmem:[%s4 + $0x10] sm:$0xf] %v317
  %350 = vst [vmem:[%s4 + $0x14] sm:$0xf] %v318
  %351 = vst [vmem:[%s4 + $0x18] sm:$0xf] %v319
  %352 = vst [vmem:[%s4 + $0x1c] sm:$0xf] %v320
  %353 = vst [vmem:[%s4 + $0x20] sm:$0xf] %v321
  %354 = vst [vmem:[%s4 + $0x24] sm:$0xf] %v322
  %355 = vst [vmem:[%s4 + $0x28] sm:$0xf] %v323
  %356 = vst [vmem:[%s4 + $0x2c] sm:$0xf] %v324
  %357 = vst [vmem:[%s4 + $0x30] sm:$0xf] %v325
  %358 = vst [vmem:[%s4 + $0x34] sm:$0xf] %v326
  %359 = vst [vmem:[%s4 + $0x38] sm:$0xf] %v327
  %360 = vst [vmem:[%s4 + $0x3c] sm:$0xf] %v328
  // Predicated region
  $region18: #{_lambda_.15} parent=0 // pred_check
    _
  $region19: #{_lambda_.15} parent=0 // pred_check_branch
    %362 = sbr.rel (0) target = $region21
  $region20: #{_lambda_.15} parent=0 // pred_region
    _
  $region21: #{_lambda_.15} parent=0 // pred_fallthru
    _
  // Predicated region
  $region22: #{_lambda_.15} parent=0 // pred_check
    _
  $region23: #{_lambda_.15} parent=0 // pred_check_branch
    %364 = sbr.rel (0) target = $region25
  $region24: #{_lambda_.15} parent=0 // pred_region
    _
  $region25: #{_lambda_.15} parent=0 // pred_fallthru
    _

// kernel: _lambda_.16
$region0: #{_lambda_.16}
  #allocation0 [shape = 'u32[]', space=smem, size = 0x4, offset = 0x4, fixed_abs, tag = 'smem constant byte address 0x4 - core index']
  #allocation1 [shape = 'u32[144,128]{1,0:T(1,128)}', space=vmem, size = 0x12000, scoped, tag = 'internal scratch']
  %s0 = inlined_call_operand.vmem [shape: bf16[32,128], index: 0, kind: input, shape index: {}]
  %s1 = inlined_call_operand.vmem [shape: f32[1,128], index: 1, kind: input, shape index: {}]
  %s2 = inlined_call_operand.vmem [shape: f32[1,128], index: 2, kind: input, shape index: {}, may-alias: {2,4}]
  %s3 = inlined_call_operand.vmem [shape: bf16[128,128], index: 3, kind: input, shape index: {}]
  %s4 = inlined_call_operand.vmem [shape: f32[1,128], index: 4, kind: input, shape index: {}, may-alias: {2,4}]
  %s5 = inlined_call_operand.vmem [shape: bf16[32,128], index: 5, kind: output, shape index: {}]
  %s6 = sld [smem:[#allocation0]]
  $region30: #{_lambda_.16} parent=0
    _
  %s8 = ssub.s32 1, %s6
  %s9 = scalar_select 0, %s8, %s6
  // Predicated region
  $region2: #{_lambda_.16} parent=0 // pred_check
    _
  $region3: #{_lambda_.16} parent=0 // pred_check_branch
    %11 = sbr.rel (0) target = $region5
  $region4: #{_lambda_.16} parent=0 // pred_region
    _
  $region5: #{_lambda_.16} parent=0 // pred_fallthru
    _
  // Predicated region
  $region6: #{_lambda_.16} parent=0 // pred_check
    _
  $region7: #{_lambda_.16} parent=0 // pred_check_branch
    %13 = sbr.rel (0) target = $region9
  $region8: #{_lambda_.16} parent=0 // pred_region
    _
  $region9: #{_lambda_.16} parent=0 // pred_fallthru
    _
  // Predicated region
  $region10: #{_lambda_.16} parent=0 // pred_check
    _
  $region11: #{_lambda_.16} parent=0 // pred_check_branch
    %15 = sbr.rel (0) target = $region13
  $region12: #{_lambda_.16} parent=0 // pred_region
    _
  $region13: #{_lambda_.16} parent=0 // pred_fallthru
    _
  // Predicated region
  $region14: #{_lambda_.16} parent=0 // pred_check
    _
  $region15: #{_lambda_.16} parent=0 // pred_check_branch
    %17 = sbr.rel (0) target = $region17
  $region16: #{_lambda_.16} parent=0 // pred_region
    _
  $region17: #{_lambda_.16} parent=0 // pred_fallthru
    _
  // Predicated region
  $region18: #{_lambda_.16} parent=0 // pred_check
    _
  $region19: #{_lambda_.16} parent=0 // pred_check_branch
    %19 = sbr.rel (0) target = $region21
  $region20: #{_lambda_.16} parent=0 // pred_region
    _
  $region21: #{_lambda_.16} parent=0 // pred_fallthru
    _
  %v21 = vld [vmem:[%s0] sm:$0xf]
  %v22 = vld [vmem:[%s0 + $0x4] sm:$0xf]
  %v23 = vld [vmem:[%s0 + $0x8] sm:$0xf]
  %v24 = vld [vmem:[%s0 + $0xc] sm:$0xf]
  %v25 = vunpack.c.l.bf16 %v21
  %v26 = vunpack.c.l.bf16 %v22
  %v27 = vunpack.c.l.bf16 %v23
  %v28 = vunpack.c.l.bf16 %v24
  %v29 = vld [vmem:[%s1] sm:$0x1]
  %v31 = vlaneseq
  %v32 = vshrl.u32 %v31, 7
  %v33 = vsub.s32 0, %v32
  %v34 = vrot.slane %v29, %v33
  %v36 = vmul.f32 %v25, %v34
  %v37 = vmul.f32 %v26, %v34
  %v38 = vmul.f32 %v27, %v34
  %v39 = vmul.f32 %v28, %v34
  %v40 = vld [vmem:[%s2] sm:$0x1]
  %v42 = vlaneseq
  %v43 = vshrl.u32 %v42, 7
  %v44 = vsub.s32 0, %v43
  %v45 = vrot.slane %v40, %v44
  %v47 = vadd.f32 %v36, %v45
  %v48 = vadd.f32 %v37, %v45
  %v49 = vadd.f32 %v38, %v45
  %v50 = vadd.f32 %v39, %v45
  %v51 = vmax.f32 %v47, 0.0
  %v52 = vmax.f32 %v48, 0.0
  %v53 = vmax.f32 %v49, 0.0
  %v54 = vmax.f32 %v50, 0.0
  %v55 = vpack.c.bf16 %v52, %v51
  %v56 = vpack.c.bf16 %v54, %v53
  %v57 = vld [vmem:[%s3] sm:$0xf]
  %v58 = vld [vmem:[%s3 + $0x4] sm:$0xf]
  %v59 = vld [vmem:[%s3 + $0x8] sm:$0xf]
  %v60 = vld [vmem:[%s3 + $0xc] sm:$0xf]
  %v61 = vld [vmem:[%s3 + $0x10] sm:$0xf]
  %v62 = vld [vmem:[%s3 + $0x14] sm:$0xf]
  %v63 = vld [vmem:[%s3 + $0x18] sm:$0xf]
  %v64 = vld [vmem:[%s3 + $0x1c] sm:$0xf]
  %v65 = vld [vmem:[%s3 + $0x20] sm:$0xf]
  %v66 = vld [vmem:[%s3 + $0x24] sm:$0xf]
  %v67 = vld [vmem:[%s3 + $0x28] sm:$0xf]
  %v68 = vld [vmem:[%s3 + $0x2c] sm:$0xf]
  %v69 = vld [vmem:[%s3 + $0x30] sm:$0xf]
  %v70 = vld [vmem:[%s3 + $0x34] sm:$0xf]
  %v71 = vld [vmem:[%s3 + $0x38] sm:$0xf]
  %v72 = vld [vmem:[%s3 + $0x3c] sm:$0xf]
  %v73 = vld [vmem:[%s4] sm:$0x1]
  %v75 = vlaneseq
  %v76 = vshrl.u32 %v75, 7
  %v77 = vsub.s32 0, %v76
  %v78 = vrot.slane %v73, %v77
  %v96 = vunpack.c.l.b16 %v57
  %v97 = vunpack.c.l.b16 %v58
  %v98 = vunpack.c.l.b16 %v59
  %v99 = vunpack.c.l.b16 %v60
  %v100 = vunpack.c.l.b16 %v61
  %v101 = vunpack.c.l.b16 %v62
  %v102 = vunpack.c.l.b16 %v63
  %v103 = vunpack.c.l.b16 %v64
  %v104 = vunpack.c.l.b16 %v65
  %v105 = vunpack.c.l.b16 %v66
  %v106 = vunpack.c.l.b16 %v67
  %v107 = vunpack.c.l.b16 %v68
  %v108 = vunpack.c.l.b16 %v69
  %v109 = vunpack.c.l.b16 %v70
  %v110 = vunpack.c.l.b16 %v71
  %v111 = vunpack.c.l.b16 %v72
  %v112 = vpack.c.b16 %v97, %v96
  %v113 = vpack.c.b16 %v99, %v98
  %v114 = vpack.c.b16 %v101, %v100
  %v115 = vpack.c.b16 %v103, %v102
  %v116 = vpack.c.b16 %v105, %v104
  %v117 = vpack.c.b16 %v107, %v106
  %v118 = vpack.c.b16 %v109, %v108
  %v119 = vpack.c.b16 %v111, %v110
  %128 = vmatprep.subr.bf16.mxu0 0
  %129 = vmatpush1.bf16.msra.mxu0 %v112
  %130 = vmatprep.subr.bf16.mxu0 0
  %131 = vmatpush1.bf16.msra.mxu0 %v113
  %132 = vmatprep.subr.bf16.mxu0 0
  %133 = vmatpush1.bf16.msra.mxu0 %v114
  %134 = vmatprep.subr.bf16.mxu0 0
  %135 = vmatpush1.bf16.msra.mxu0 %v115
  %136 = vmatprep.subr.bf16.mxu0 0
  %137 = vmatpush1.bf16.msra.mxu0 %v116
  %138 = vmatprep.subr.bf16.mxu0 0
  %139 = vmatpush1.bf16.msra.mxu0 %v117
  %140 = vmatprep.subr.bf16.mxu0 0
  %141 = vmatpush1.bf16.msra.mxu0 %v118
  %142 = vmatprep.subr.bf16.mxu0 0
  %143 = vmatpush1.bf16.msra.mxu0 %v119
  %144 = vmatprep.subr.bf16.mxu0 0
  %145 = vmatpush1.bf16.msra.mxu0 0
  %146 = vmatprep.subr.bf16.mxu0 0
  %147 = vmatpush1.bf16.msra.mxu0 0
  %148 = vmatprep.subr.bf16.mxu0 0
  %149 = vmatpush1.bf16.msra.mxu0 0
  %150 = vmatprep.subr.bf16.mxu0 0
  %151 = vmatpush1.bf16.msra.mxu0 0
  %152 = vmatprep.subr.bf16.mxu0 0
  %153 = vmatpush1.bf16.msra.mxu0 0
  %154 = vmatprep.subr.bf16.mxu0 0
  %155 = vmatpush1.bf16.msra.mxu0 0
  %156 = vmatprep.subr.bf16.mxu0 0
  %157 = vmatpush1.bf16.msra.mxu0 0
  %158 = vmatprep.subr.bf16.mxu0 0
  %159 = vmatpush1.bf16.msra.mxu0 0
  %160 = vmatprep.mubr.bf16.mxu0 0
  %161 = vmatmul.mubr.bf16.gmra.mrb[0].mxu0 %v55
  %v162 = vpop.f32.mrb[0].mxu0
  %v163 = vadd.f32 %v78, %v162
  %v164 = vpop.f32.mrb[0].mxu0
  %v165 = vpop.f32.mrb[0].mxu0
  %v166 = vadd.f32 %v78, %v165
  %v167 = vpop.f32.mrb[0].mxu0
  %168 = vmatprep.mubr.bf16.mxu0 0
  %169 = vmatmul.mubr.bf16.gmra.mrb[0].mxu0 %v56
  %v170 = vpop.f32.mrb[0].mxu0
  %v171 = vadd.f32 %v78, %v170
  %v172 = vpop.f32.mrb[0].mxu0
  %v173 = vpop.f32.mrb[0].mxu0
  %v174 = vadd.f32 %v78, %v173
  %v175 = vpop.f32.mrb[0].mxu0
  %176 = vdwg.mxu0
  %v177 = vmax.f32 %v163, 0.0
  %v178 = vmax.f32 %v166, 0.0
  %v179 = vmax.f32 %v171, 0.0
  %v180 = vmax.f32 %v174, 0.0
  %v181 = vpack.c.bf16 %v178, %v177
  %v182 = vpack.c.bf16 %v180, %v179
  %v185 = vunpack.c.l.b16 %v181
  %v186 = vunpack.c.h.b16 %v181
  %v187 = vunpack.c.l.b16 %v182
  %v188 = vunpack.c.h.b16 %v182
  %v189 = vpack.c.b16 %v185, %v185
  %v190 = vpack.c.b16 %v186, %v186
  %v191 = vpack.c.b16 %v187, %v187
  %v192 = vpack.c.b16 %v188, %v188
  %197 = vst [vmem:[%s5] sm:$0xf] %v189
  %198 = vst [vmem:[%s5 + $0x4] sm:$0xf] %v190
  %199 = vst [vmem:[%s5 + $0x8] sm:$0xf] %v191
  %200 = vst [vmem:[%s5 + $0xc] sm:$0xf] %v192
  // Predicated region
  $region22: #{_lambda_.16} parent=0 // pred_check
    _
  $region23: #{_lambda_.16} parent=0 // pred_check_branch
    %202 = sbr.rel (0) target = $region25
  $region24: #{_lambda_.16} parent=0 // pred_region
    _
  $region25: #{_lambda_.16} parent=0 // pred_fallthru
    _
  // Predicated region
  $region26: #{_lambda_.16} parent=0 // pred_check
    _
  $region27: #{_lambda_.16} parent=0 // pred_check_branch
    %204 = sbr.rel (0) target = $region29
  $region28: #{_lambda_.16} parent=0 // pred_region
    _
  $region29: #{_lambda_.16} parent=0 // pred_fallthru
    _

// kernel: _lambda_.17
$region0: #{_lambda_.17}
  #allocation0 [shape = 'u32[]', space=smem, size = 0x4, offset = 0x4, fixed_abs, tag = 'smem constant byte address 0x4 - core index']
  #allocation1 [shape = 'u32[144,128]{1,0:T(1,128)}', space=vmem, size = 0x12000, scoped, tag = 'internal scratch']
  %s0 = inlined_call_operand.vmem [shape: bf16[32,256], index: 0, kind: input, shape index: {}]
  %s1 = inlined_call_operand.vmem [shape: bf16[256,128], index: 1, kind: input, shape index: {}]
  %s2 = inlined_call_operand.vmem [shape: bf16[32,128], index: 2, kind: output, shape index: {}]
  %s3 = sld [smem:[#allocation0]]
  $region18: #{_lambda_.17} parent=0
    _
  %s5 = ssub.s32 1, %s3
  %s6 = scalar_select 0, %s5, %s3
  // Predicated region
  $region2: #{_lambda_.17} parent=0 // pred_check
    _
  $region3: #{_lambda_.17} parent=0 // pred_check_branch
    %8 = sbr.rel (0) target = $region5
  $region4: #{_lambda_.17} parent=0 // pred_region
    _
  $region5: #{_lambda_.17} parent=0 // pred_fallthru
    _
  // Predicated region
  $region6: #{_lambda_.17} parent=0 // pred_check
    _
  $region7: #{_lambda_.17} parent=0 // pred_check_branch
    %10 = sbr.rel (0) target = $region9
  $region8: #{_lambda_.17} parent=0 // pred_region
    _
  $region9: #{_lambda_.17} parent=0 // pred_fallthru
    _
  %v12 = vld [vmem:[%s0] sm:$0xff]
  %v13 = vld [vmem:[%s0 + $0x8] sm:$0xff]
  %v14 = vld [vmem:[%s0 + $0x10] sm:$0xff]
  %v15 = vld [vmem:[%s0 + $0x18] sm:$0xff]
  %v16 = vld [vmem:[%s1] sm:$0xf]
  %v17 = vld [vmem:[%s1 + $0x4] sm:$0xf]
  %v18 = vld [vmem:[%s1 + $0x8] sm:$0xf]
  %v19 = vld [vmem:[%s1 + $0xc] sm:$0xf]
  %v20 = vld [vmem:[%s1 + $0x10] sm:$0xf]
  %v21 = vld [vmem:[%s1 + $0x14] sm:$0xf]
  %v22 = vld [vmem:[%s1 + $0x18] sm:$0xf]
  %v23 = vld [vmem:[%s1 + $0x1c] sm:$0xf]
  %v24 = vld [vmem:[%s1 + $0x20] sm:$0xf]
  %v25 = vld [vmem:[%s1 + $0x24] sm:$0xf]
  %v26 = vld [vmem:[%s1 + $0x28] sm:$0xf]
  %v27 = vld [vmem:[%s1 + $0x2c] sm:$0xf]
  %v28 = vld [vmem:[%s1 + $0x30] sm:$0xf]
  %v29 = vld [vmem:[%s1 + $0x34] sm:$0xf]
  %v30 = vld [vmem:[%s1 + $0x38] sm:$0xf]
  %v31 = vld [vmem:[%s1 + $0x3c] sm:$0xf]
  %v32 = vld [vmem:[%s1 + $0x40] sm:$0xf]
  %v33 = vld [vmem:[%s1 + $0x44] sm:$0xf]
  %v34 = vld [vmem:[%s1 + $0x48] sm:$0xf]
  %v35 = vld [vmem:[%s1 + $0x4c] sm:$0xf]
  %v36 = vld [vmem:[%s1 + $0x50] sm:$0xf]
  %v37 = vld [vmem:[%s1 + $0x54] sm:$0xf]
  %v38 = vld [vmem:[%s1 + $0x58] sm:$0xf]
  %v39 = vld [vmem:[%s1 + $0x5c] sm:$0xf]
  %v40 = vld [vmem:[%s1 + $0x60] sm:$0xf]
  %v41 = vld [vmem:[%s1 + $0x64] sm:$0xf]
  %v42 = vld [vmem:[%s1 + $0x68] sm:$0xf]
  %v43 = vld [vmem:[%s1 + $0x6c] sm:$0xf]
  %v44 = vld [vmem:[%s1 + $0x70] sm:$0xf]
  %v45 = vld [vmem:[%s1 + $0x74] sm:$0xf]
  %v46 = vld [vmem:[%s1 + $0x78] sm:$0xf]
  %v47 = vld [vmem:[%s1 + $0x7c] sm:$0xf]
  %v52 = vunpack.c.l.b16 %v12
  %v53 = vunpack.c.h.b16 %v12
  %v54 = vunpack.c.l.b16 %v13
  %v55 = vunpack.c.h.b16 %v13
  %v56 = vunpack.c.l.b16 %v14
  %v57 = vunpack.c.h.b16 %v14
  %v58 = vunpack.c.l.b16 %v15
  %v59 = vunpack.c.h.b16 %v15
  %v60 = vpack.c.b16 %v54, %v52
  %v61 = vpack.c.b16 %v55, %v53
  %v62 = vpack.c.b16 %v58, %v56
  %v63 = vpack.c.b16 %v59, %v57
  %v100 = vunpack.c.l.b16 %v16
  %v101 = vunpack.c.l.b16 %v17
  %v102 = vunpack.c.l.b16 %v18
  %v103 = vunpack.c.l.b16 %v19
  %v104 = vunpack.c.l.b16 %v20
  %v105 = vunpack.c.l.b16 %v21
  %v106 = vunpack.c.l.b16 %v22
  %v107 = vunpack.c.l.b16 %v23
  %v108 = vunpack.c.l.b16 %v24
  %v109 = vunpack.c.l.b16 %v25
  %v110 = vunpack.c.l.b16 %v26
  %v111 = vunpack.c.l.b16 %v27
  %v112 = vunpack.c.l.b16 %v28
  %v113 = vunpack.c.l.b16 %v29
  %v114 = vunpack.c.l.b16 %v30
  %v115 = vunpack.c.l.b16 %v31
  %v116 = vunpack.c.l.b16 %v32
  %v117 = vunpack.c.l.b16 %v33
  %v118 = vunpack.c.l.b16 %v34
  %v119 = vunpack.c.l.b16 %v35
  %v120 = vunpack.c.l.b16 %v36
  %v121 = vunpack.c.l.b16 %v37
  %v122 = vunpack.c.l.b16 %v38
  %v123 = vunpack.c.l.b16 %v39
  %v124 = vunpack.c.l.b16 %v40
  %v125 = vunpack.c.l.b16 %v41
  %v126 = vunpack.c.l.b16 %v42
  %v127 = vunpack.c.l.b16 %v43
  %v128 = vunpack.c.l.b16 %v44
  %v129 = vunpack.c.l.b16 %v45
  %v130 = vunpack.c.l.b16 %v46
  %v131 = vunpack.c.l.b16 %v47
  %v132 = vpack.c.b16 %v101, %v100
  %v133 = vpack.c.b16 %v103, %v102
  %v134 = vpack.c.b16 %v105, %v104
  %v135 = vpack.c.b16 %v107, %v106
  %v136 = vpack.c.b16 %v109, %v108
  %v137 = vpack.c.b16 %v111, %v110
  %v138 = vpack.c.b16 %v113, %v112
  %v139 = vpack.c.b16 %v115, %v114
  %v140 = vpack.c.b16 %v117, %v116
  %v141 = vpack.c.b16 %v119, %v118
  %v142 = vpack.c.b16 %v121, %v120
  %v143 = vpack.c.b16 %v123, %v122
  %v144 = vpack.c.b16 %v125, %v124
  %v145 = vpack.c.b16 %v127, %v126
  %v146 = vpack.c.b16 %v129, %v128
  %v147 = vpack.c.b16 %v131, %v130
  %164 = vmatprep.subr.bf16.mxu0 0
  %165 = vmatpush1.bf16.msra.mxu0 %v132
  %166 = vmatprep.subr.bf16.mxu0 0
  %167 = vmatpush1.bf16.msra.mxu0 %v133
  %168 = vmatprep.subr.bf16.mxu0 0
  %169 = vmatpush1.bf16.msra.mxu0 %v134
  %170 = vmatprep.subr.bf16.mxu0 0
  %171 = vmatpush1.bf16.msra.mxu0 %v135
  %172 = vmatprep.subr.bf16.mxu0 0
  %173 = vmatpush1.bf16.msra.mxu0 %v136
  %174 = vmatprep.subr.bf16.mxu0 0
  %175 = vmatpush1.bf16.msra.mxu0 %v137
  %176 = vmatprep.subr.bf16.mxu0 0
  %177 = vmatpush1.bf16.msra.mxu0 %v138
  %178 = vmatprep.subr.bf16.mxu0 0
  %179 = vmatpush1.bf16.msra.mxu0 %v139
  %180 = vmatprep.subr.bf16.mxu0 0
  %181 = vmatpush1.bf16.msra.mxu0 %v140
  %182 = vmatprep.subr.bf16.mxu0 0
  %183 = vmatpush1.bf16.msra.mxu0 %v141
  %184 = vmatprep.subr.bf16.mxu0 0
  %185 = vmatpush1.bf16.msra.mxu0 %v142
  %186 = vmatprep.subr.bf16.mxu0 0
  %187 = vmatpush1.bf16.msra.mxu0 %v143
  %188 = vmatprep.subr.bf16.mxu0 0
  %189 = vmatpush1.bf16.msra.mxu0 %v144
  %190 = vmatprep.subr.bf16.mxu0 0
  %191 = vmatpush1.bf16.msra.mxu0 %v145
  %192 = vmatprep.subr.bf16.mxu0 0
  %193 = vmatpush1.bf16.msra.mxu0 %v146
  %194 = vmatprep.subr.bf16.mxu0 0
  %195 = vmatpush1.bf16.msra.mxu0 %v147
  %196 = vmatprep.mubr.bf16.mxu0 %v61
  %197 = vmatmul.mubr.bf16.gmra.mrb[0].mxu0 %v60
  %v198 = vpop.f32.mrb[0].mxu0
  %v199 = vadd.f32 0.0, %v198
  %v200 = vpop.f32.mrb[0].mxu0
  %v201 = vpop.f32.mrb[0].mxu0
  %v202 = vadd.f32 0.0, %v201
  %v203 = vpop.f32.mrb[0].mxu0
  %204 = vmatprep.mubr.bf16.mxu0 %v63
  %205 = vmatmul.mubr.bf16.gmra.mrb[0].mxu0 %v62
  %v206 = vpop.f32.mrb[0].mxu0
  %v207 = vadd.f32 0.0, %v206
  %v208 = vpop.f32.mrb[0].mxu0
  %v209 = vpop.f32.mrb[0].mxu0
  %v210 = vadd.f32 0.0, %v209
  %v211 = vpop.f32.mrb[0].mxu0
  %212 = vdwg.mxu0
  %v213 = vpack.c.bf16 %v202, %v199
  %v214 = vpack.c.bf16 %v210, %v207
  %v217 = vunpack.c.l.b16 %v213
  %v218 = vunpack.c.h.b16 %v213
  %v219 = vunpack.c.l.b16 %v214
  %v220 = vunpack.c.h.b16 %v214
  %v221 = vpack.c.b16 %v217, %v217
  %v222 = vpack.c.b16 %v218, %v218
  %v223 = vpack.c.b16 %v219, %v219
  %v224 = vpack.c.b16 %v220, %v220
  %229 = vst [vmem:[%s2] sm:$0xf] %v221
  %230 = vst [vmem:[%s2 + $0x4] sm:$0xf] %v222
  %231 = vst [vmem:[%s2 + $0x8] sm:$0xf] %v223
  %232 = vst [vmem:[%s2 + $0xc] sm:$0xf] %v224
  // Predicated region
  $region10: #{_lambda_.17} parent=0 // pred_check
    _
  $region11: #{_lambda_.17} parent=0 // pred_check_branch
    %234 = sbr.rel (0) target = $region13
  $region12: #{_lambda_.17} parent=0 // pred_region
    _
  $region13: #{_lambda_.17} parent=0 // pred_fallthru
    _
  // Predicated region
  $region14: #{_lambda_.17} parent=0 // pred_check
    _
  $region15: #{_lambda_.17} parent=0 // pred_check_branch
    %236 = sbr.rel (0) target = $region17
  $region16: #{_lambda_.17} parent=0 // pred_region
    _
  $region17: #{_lambda_.17} parent=0 // pred_fallthru
    _

</llo_original>
